<compile_context>
chip_gen: v5e
topology: v5e:2x2
jax: 0.10.0
libtpu: 0.0.40
codegen_flags: <defaults>
</compile_context>

<pallas_src>
import functools

import jax
import jax.numpy as jnp
from jax.experimental import pallas as pl
from jax.experimental.pallas import tpu as pltpu


def _im2col_cmajor(x2, W, w_lo_ok, w_hi_ok):
    """Channel-major im2col for a 3x3 conv with replicate padding.

    x2: (C, H*W) single image, channel-major (bf16).
    Returns (9*C, H*W) patches; row order tap*C + ci with tap = ky*3 + kx.
    """
    C, HW = x2.shape
    # Row-replicated flattened view with 1-column don't-care guards:
    #   xe[:, 1 + (1 + r)*W + w] == x[clip(r, 0, H-1), w]   for r in [-1, H].
    xe = jnp.concatenate(
        [x2[:, :1], x2[:, :W], x2, x2[:, HW - W:], x2[:, :1]], axis=1)
    taps = []
    for dy in (-1, 0, 1):
        base = 1 + (1 + dy) * W
        center = xe[:, base:base + HW]                     # x[clip(h+dy), w]
        for dx in (-1, 0, 1):
            if dx == 0:
                taps.append(center)
            else:
                # x[clip(h+dy), w+dx] where valid; replicate (= center) at the
                # W boundary.  Wrapped guard values are always masked out.
                shifted = xe[:, base + dx:base + dx + HW]
                ok = w_lo_ok if dx < 0 else w_hi_ok
                taps.append(jnp.where(ok, shifted, center))
    return jnp.concatenate(taps, axis=0)                   # (9*C, H*W)


def block_type2_kernel(x_ref, w1_ref, b1_ref, w2_ref, b2_ref, o_ref, *, H, W):
    # x_ref/o_ref: (bb, C, H*W); w*_ref: (C, 9*C) bf16; b*_ref: (C, 1) f32.
    bb, C, HW = x_ref.shape
    assert HW == H * W

    w1 = w1_ref[...]
    w2 = w2_ref[...]
    b1 = b1_ref[...]
    b2 = b2_ref[...]

    # Lane-position masks for the +/-1 column taps; computed once and shared
    # by both convs and all images in this grid step.
    w_idx = jax.lax.broadcasted_iota(jnp.int32, (C, HW), 1) % W
    w_lo_ok = w_idx >= 1          # column w-1 exists
    w_hi_ok = w_idx <= W - 2      # column w+1 exists

    x_imgs = [x_ref[b] for b in range(bb)]                 # each (C, HW)

    # ---- conv1 (BN1 scale folded into w1) + bias + ReLU ----------------------
    p1 = jnp.concatenate(
        [_im2col_cmajor(xb.astype(jnp.bfloat16), W, w_lo_ok, w_hi_ok)
         for xb in x_imgs], axis=1)                        # (9C, bb*HW) bf16
    h = jnp.dot(w1, p1, preferred_element_type=jnp.float32)  # (C, bb*HW) f32
    h = jnp.maximum(h + b1, 0.0)

    # ---- conv2 (BN2 scale folded into w2) + bias + residual ------------------
    h_bf = h.astype(jnp.bfloat16)
    p2 = jnp.concatenate(
        [_im2col_cmajor(h_bf[:, b * HW:(b + 1) * HW], W, w_lo_ok, w_hi_ok)
         for b in range(bb)], axis=1)                      # (9C, bb*HW) bf16
    y = jnp.dot(w2, p2, preferred_element_type=jnp.float32) + b2

    for b in range(bb):                                    # lane-dense stores
        o_ref[b] = (y[:, b * HW:(b + 1) * HW]
                    + x_imgs[b].astype(jnp.float32)).astype(o_ref.dtype)


def block_type2(x_nchw, w1_cm, b1, w2_cm, b2, *, batch_block=None):
    """x_nchw: (N, C, H, W); w*_cm: (C, 9*C) bf16; b*: (C, 1) f32."""
    N, C, H, W = x_nchw.shape
    HW = H * W
    assert w1_cm.shape == (C, 9 * C) and w2_cm.shape == (C, 9 * C)
    if batch_block is None:
        # Fold half the batch into each grid step (bigger matmuls, fewer
        # per-step overheads) while keeping >= 2 "parallel" steps so both v7x
        # TensorCores get work when N >= 2.
        batch_block = N // 2 if (N >= 2 and N % 2 == 0) else 1
    assert N % batch_block == 0
    grid = (N // batch_block,)

    kernel = functools.partial(block_type2_kernel, H=H, W=W)
    batched = lambda g: (g, 0, 0)
    full = lambda g: (0, 0)
    out = pl.pallas_call(
        kernel,
        out_shape=jax.ShapeDtypeStruct((N, C, HW), x_nchw.dtype),
        grid_spec=pltpu.PrefetchScalarGridSpec(
            num_scalar_prefetch=0,
            grid=grid,
            in_specs=[
                pl.BlockSpec((batch_block, C, HW), batched),   # x (lane-dense)
                pl.BlockSpec((C, 9 * C), full),                # w1
                pl.BlockSpec((C, 1), full),                    # b1
                pl.BlockSpec((C, 9 * C), full),                # w2
                pl.BlockSpec((C, 1), full),                    # b2
            ],
            out_specs=pl.BlockSpec((batch_block, C, HW), batched),
        ),
        compiler_params=pltpu.CompilerParams(
            dimension_semantics=("parallel",),
            vmem_limit_bytes=32 * 1024 * 1024,
        ),
    )(x_nchw.reshape(N, C, HW), w1_cm, b1, w2_cm, b2)
    return out.reshape(N, C, H, W)


def fold_bn_into_conv(w_oihw, gamma, beta, mean, var, eps=1e-5):
    """Fold eval-mode BN into the conv; channel-major layout for the kernel.

    Returns:
      w_cm: (Cout, 9*Cin) bf16, column = (ky*3 + kx)*Cin + ci, BN scale folded.
      bias: (Cout, 1) f32, bias = beta - mean * scale.
    """
    Co, Ci, KH, KW = w_oihw.shape
    scale = gamma / jnp.sqrt(var + eps)                              # (Co,)
    bias = (beta - mean * scale).reshape(Co, 1).astype(jnp.float32)
    w_cm = jnp.transpose(w_oihw, (0, 2, 3, 1)).reshape(Co, KH * KW * Ci)
    w_cm = w_cm * scale[:, None]
    return w_cm.astype(jnp.bfloat16), bias


# ----------------------------- pure-JAX reference -----------------------------
def _ref_block_type2(x, w1, g1, b1, m1, v1, w2, g2, b2, m2, v2, eps=1e-5):
    # x: NCHW, w*: OIHW (PyTorch conventions), f32 throughout.
    def conv(a, w):
        ap = jnp.pad(a, ((0, 0), (0, 0), (1, 1), (1, 1)), mode="edge")
        return jax.lax.conv_general_dilated(
            ap, w, window_strides=(1, 1), padding="VALID",
            dimension_numbers=("NCHW", "OIHW", "NCHW"))

    def bn(a, g, b, m, v):
        c = lambda t: t[None, :, None, None]
        return (a - c(m)) / jnp.sqrt(c(v) + eps) * c(g) + c(b)

    h = jax.nn.relu(bn(conv(x, w1), g1, b1, m1, v1))
    h = bn(conv(h, w2), g2, b2, m2, v2)
    return h + x


if __name__ == "__main__":
    N, C, H, W = 2, 32, 16, 16   # inplanes == planes (required by the residual)
    eps = 1e-5
    key = jax.random.PRNGKey(0)
    ks = jax.random.split(key, 11)

    x_nchw = jax.random.normal(ks[0], (N, C, H, W), jnp.float32)

    std = (2.0 / (9 * C)) ** 0.5
    w1_oihw = jax.random.normal(ks[1], (C, C, 3, 3), jnp.float32) * std
    w2_oihw = jax.random.normal(ks[2], (C, C, 3, 3), jnp.float32) * std

    g1 = 1.0 + 0.1 * jax.random.normal(ks[3], (C,), jnp.float32)
    b1 = 0.1 * jax.random.normal(ks[4], (C,), jnp.float32)
    m1 = 0.1 * jax.random.normal(ks[5], (C,), jnp.float32)
    v1 = jnp.abs(jax.random.normal(ks[6], (C,), jnp.float32)) + 0.5
    g2 = 1.0 + 0.1 * jax.random.normal(ks[7], (C,), jnp.float32)
    b2 = 0.1 * jax.random.normal(ks[8], (C,), jnp.float32)
    m2 = 0.1 * jax.random.normal(ks[9], (C,), jnp.float32)
    v2 = jnp.abs(jax.random.normal(ks[10], (C,), jnp.float32)) + 0.5

    # Host-side prep: fold BN scale into channel-major (C, 9C) bf16 weights.
    w1m, bb1 = fold_bn_into_conv(w1_oihw, g1, b1, m1, v1, eps)
    w2m, bb2 = fold_bn_into_conv(w2_oihw, g2, b2, m2, v2, eps)

    out = jax.block_until_ready(block_type2(x_nchw, w1m, bb1, w2m, bb2))

    ref = _ref_block_type2(x_nchw, w1_oihw, g1, b1, m1, v1,
                           w2_oihw, g2, b2, m2, v2, eps)
    assert out.shape == ref.shape == (N, C, H, W)
    # bf16 MXU operands (f32 accumulation) -> looser tolerance than pure f32.
    max_err = float(jnp.max(jnp.abs(out - ref)))
    mean_err = float(jnp.mean(jnp.abs(out - ref)))
    assert jnp.allclose(out, ref, atol=1e-1, rtol=1e-1), (max_err, mean_err)
    assert mean_err < 3e-2, (max_err, mean_err)
    print("KERNEL_OK")
</pallas_src>

<mosaic_0001>
module attributes {stable_mosaic.version = 11 : i64} {
  func.func @block_type2_kernel(%arg0: i32, %arg1: memref<1x32x256xf32, #tpu.memory_space<vmem>>, %arg2: memref<32x288xbf16, #tpu.memory_space<vmem>>, %arg3: memref<32x1xf32, #tpu.memory_space<vmem>>, %arg4: memref<32x288xbf16, #tpu.memory_space<vmem>>, %arg5: memref<32x1xf32, #tpu.memory_space<vmem>>, %arg6: memref<1x32x256xf32, #tpu.memory_space<vmem>>) attributes {dimension_semantics = [#tpu.dimension_semantics<parallel>], iteration_bounds = array<i64: 2>, scalar_prefetch = 0 : i64, scratch_operands = 0 : i64, tpu.core_type = #tpu.core_type<tc>, window_params = [{transform_indices = @transform_0, window_bounds = array<i64: 1, 32, 256>}, {pipeline_mode = #tpu.pipeline_mode<synchronous>, transform_indices = @transform_1, window_bounds = array<i64: 32, 288>}, {pipeline_mode = #tpu.pipeline_mode<synchronous>, transform_indices = @transform_2, window_bounds = array<i64: 32, 1>}, {pipeline_mode = #tpu.pipeline_mode<synchronous>, transform_indices = @transform_3, window_bounds = array<i64: 32, 288>}, {pipeline_mode = #tpu.pipeline_mode<synchronous>, transform_indices = @transform_4, window_bounds = array<i64: 32, 1>}, {transform_indices = @transform_5, window_bounds = array<i64: 1, 32, 256>}]} {
    %c0 = arith.constant 0 : index
    %c0_0 = arith.constant 0 : index
    %0 = vector.load %arg2[%c0, %c0_0] : memref<32x288xbf16, #tpu.memory_space<vmem>>, vector<32x288xbf16>
    %c0_1 = arith.constant 0 : index
    %c0_2 = arith.constant 0 : index
    %1 = vector.load %arg4[%c0_1, %c0_2] : memref<32x288xbf16, #tpu.memory_space<vmem>>, vector<32x288xbf16>
    %c0_3 = arith.constant 0 : index
    %c0_4 = arith.constant 0 : index
    %2 = vector.load %arg3[%c0_3, %c0_4] : memref<32x1xf32, #tpu.memory_space<vmem>>, vector<32x1xf32>
    %c0_5 = arith.constant 0 : index
    %c0_6 = arith.constant 0 : index
    %3 = vector.load %arg5[%c0_5, %c0_6] : memref<32x1xf32, #tpu.memory_space<vmem>>, vector<32x1xf32>
    %4 = tpu.iota {dimensions = array<i32: 1>} : vector<32x256xi32>
    %c16_i32 = arith.constant 16 : i32
    %c0_i32 = arith.constant 0 : i32
    %5 = arith.cmpi eq, %c16_i32, %c0_i32 : i32
    %c1_i32 = arith.constant 1 : i32
    %6 = arith.select %5, %c1_i32, %c16_i32 : i32
    %7 = vector.broadcast %6 : i32 to vector<32x256xi32>
    %8 = arith.remsi %4, %7 : vector<32x256xi32>
    %c0_i32_7 = arith.constant 0 : i32
    %9 = vector.broadcast %c0_i32_7 : i32 to vector<32x256xi32>
    %10 = arith.cmpi ne, %8, %9 : vector<32x256xi32>
    %c0_i32_8 = arith.constant 0 : i32
    %11 = vector.broadcast %c0_i32_8 : i32 to vector<32x256xi32>
    %12 = arith.cmpi slt, %8, %11 : vector<32x256xi32>
    %c0_i32_9 = arith.constant 0 : i32
    %13 = arith.cmpi slt, %6, %c0_i32_9 : i32
    %14 = vector.broadcast %13 : i1 to vector<32x256xi1>
    %15 = vector.broadcast %14 : vector<32x256xi1> to vector<32x256xi1>
    %16 = arith.xori %12, %15 : vector<32x256xi1>
    %17 = arith.andi %16, %10 : vector<32x256xi1>
    %18 = vector.broadcast %6 : i32 to vector<32x256xi32>
    %19 = arith.addi %8, %18 : vector<32x256xi32>
    %20 = arith.select %17, %19, %8 : vector<32x256xi1>, vector<32x256xi32>
    %c1_i32_10 = arith.constant 1 : i32
    %21 = vector.broadcast %c1_i32_10 : i32 to vector<32x256xi32>
    %22 = arith.cmpi sge, %20, %21 : vector<32x256xi32>
    %c14_i32 = arith.constant 14 : i32
    %23 = vector.broadcast %c14_i32 : i32 to vector<32x256xi32>
    %24 = arith.cmpi sle, %20, %23 : vector<32x256xi32>
    %c0_11 = arith.constant 0 : index
    %c0_12 = arith.constant 0 : index
    %c0_13 = arith.constant 0 : index
    %25 = vector.load %arg1[%c0_11, %c0_12, %c0_13] : memref<1x32x256xf32, #tpu.memory_space<vmem>>, vector<1x32x256xf32>
    %26 = vector.shape_cast %25 : vector<1x32x256xf32> to vector<32x256xf32>
    %27 = arith.truncf %26 : vector<32x256xf32> to vector<32x256xbf16>
    %28 = vector.extract_strided_slice %27 {offsets = [0, 0], sizes = [32, 1], strides = [1, 1]} : vector<32x256xbf16> to vector<32x1xbf16>
    %29 = vector.extract_strided_slice %27 {offsets = [0, 0], sizes = [32, 16], strides = [1, 1]} : vector<32x256xbf16> to vector<32x16xbf16>
    %30 = vector.extract_strided_slice %27 {offsets = [0, 240], sizes = [32, 16], strides = [1, 1]} : vector<32x256xbf16> to vector<32x16xbf16>
    %31 = vector.extract_strided_slice %27 {offsets = [0, 0], sizes = [32, 1], strides = [1, 1]} : vector<32x256xbf16> to vector<32x1xbf16>
    %32 = tpu.concatenate %28, %29, %27, %30, %31 in 1 : vector<32x1xbf16>, vector<32x16xbf16>, vector<32x256xbf16>, vector<32x16xbf16>, vector<32x1xbf16> -> vector<32x290xbf16>
    %33 = vector.extract_strided_slice %32 {offsets = [0, 1], sizes = [32, 256], strides = [1, 1]} : vector<32x290xbf16> to vector<32x256xbf16>
    %34 = vector.extract_strided_slice %32 {offsets = [0, 0], sizes = [32, 256], strides = [1, 1]} : vector<32x290xbf16> to vector<32x256xbf16>
    %35 = arith.select %22, %34, %33 : vector<32x256xi1>, vector<32x256xbf16>
    %36 = vector.extract_strided_slice %32 {offsets = [0, 2], sizes = [32, 256], strides = [1, 1]} : vector<32x290xbf16> to vector<32x256xbf16>
    %37 = arith.select %24, %36, %33 : vector<32x256xi1>, vector<32x256xbf16>
    %38 = vector.extract_strided_slice %32 {offsets = [0, 17], sizes = [32, 256], strides = [1, 1]} : vector<32x290xbf16> to vector<32x256xbf16>
    %39 = vector.extract_strided_slice %32 {offsets = [0, 16], sizes = [32, 256], strides = [1, 1]} : vector<32x290xbf16> to vector<32x256xbf16>
    %40 = arith.select %22, %39, %38 : vector<32x256xi1>, vector<32x256xbf16>
    %41 = vector.extract_strided_slice %32 {offsets = [0, 18], sizes = [32, 256], strides = [1, 1]} : vector<32x290xbf16> to vector<32x256xbf16>
    %42 = arith.select %24, %41, %38 : vector<32x256xi1>, vector<32x256xbf16>
    %43 = vector.extract_strided_slice %32 {offsets = [0, 33], sizes = [32, 256], strides = [1, 1]} : vector<32x290xbf16> to vector<32x256xbf16>
    %44 = vector.extract_strided_slice %32 {offsets = [0, 32], sizes = [32, 256], strides = [1, 1]} : vector<32x290xbf16> to vector<32x256xbf16>
    %45 = arith.select %22, %44, %43 : vector<32x256xi1>, vector<32x256xbf16>
    %46 = vector.extract_strided_slice %32 {offsets = [0, 34], sizes = [32, 256], strides = [1, 1]} : vector<32x290xbf16> to vector<32x256xbf16>
    %47 = arith.select %24, %46, %43 : vector<32x256xi1>, vector<32x256xbf16>
    %48 = tpu.concatenate %35, %33, %37, %40, %38, %42, %45, %43, %47 in 0 : vector<32x256xbf16>, vector<32x256xbf16>, vector<32x256xbf16>, vector<32x256xbf16>, vector<32x256xbf16>, vector<32x256xbf16>, vector<32x256xbf16>, vector<32x256xbf16>, vector<32x256xbf16> -> vector<288x256xbf16>
    %cst = arith.constant dense<0.000000e+00> : vector<32x256xf32>
    %49 = tpu.matmul %0, %48, %cst {dimension_numbers = #tpu.dot_dimension_numbers<[1], [0], [0], [1], [0, 0, 1, 1], [], []>} : vector<32x288xbf16>, vector<288x256xbf16>, vector<32x256xf32> -> vector<32x256xf32>
    %50 = vector.broadcast %2 : vector<32x1xf32> to vector<32x256xf32>
    %51 = arith.addf %49, %50 : vector<32x256xf32>
    %cst_14 = arith.constant 0.000000e+00 : f32
    %52 = vector.broadcast %cst_14 : f32 to vector<32x256xf32>
    %53 = arith.maximumf %51, %52 : vector<32x256xf32>
    %54 = arith.truncf %53 : vector<32x256xf32> to vector<32x256xbf16>
    %55 = vector.extract_strided_slice %54 {offsets = [0, 0], sizes = [32, 1], strides = [1, 1]} : vector<32x256xbf16> to vector<32x1xbf16>
    %56 = vector.extract_strided_slice %54 {offsets = [0, 0], sizes = [32, 16], strides = [1, 1]} : vector<32x256xbf16> to vector<32x16xbf16>
    %57 = vector.extract_strided_slice %54 {offsets = [0, 240], sizes = [32, 16], strides = [1, 1]} : vector<32x256xbf16> to vector<32x16xbf16>
    %58 = vector.extract_strided_slice %54 {offsets = [0, 0], sizes = [32, 1], strides = [1, 1]} : vector<32x256xbf16> to vector<32x1xbf16>
    %59 = tpu.concatenate %55, %56, %54, %57, %58 in 1 : vector<32x1xbf16>, vector<32x16xbf16>, vector<32x256xbf16>, vector<32x16xbf16>, vector<32x1xbf16> -> vector<32x290xbf16>
    %60 = vector.extract_strided_slice %59 {offsets = [0, 1], sizes = [32, 256], strides = [1, 1]} : vector<32x290xbf16> to vector<32x256xbf16>
    %61 = vector.extract_strided_slice %59 {offsets = [0, 0], sizes = [32, 256], strides = [1, 1]} : vector<32x290xbf16> to vector<32x256xbf16>
    %62 = arith.select %22, %61, %60 : vector<32x256xi1>, vector<32x256xbf16>
    %63 = vector.extract_strided_slice %59 {offsets = [0, 2], sizes = [32, 256], strides = [1, 1]} : vector<32x290xbf16> to vector<32x256xbf16>
    %64 = arith.select %24, %63, %60 : vector<32x256xi1>, vector<32x256xbf16>
    %65 = vector.extract_strided_slice %59 {offsets = [0, 17], sizes = [32, 256], strides = [1, 1]} : vector<32x290xbf16> to vector<32x256xbf16>
    %66 = vector.extract_strided_slice %59 {offsets = [0, 16], sizes = [32, 256], strides = [1, 1]} : vector<32x290xbf16> to vector<32x256xbf16>
    %67 = arith.select %22, %66, %65 : vector<32x256xi1>, vector<32x256xbf16>
    %68 = vector.extract_strided_slice %59 {offsets = [0, 18], sizes = [32, 256], strides = [1, 1]} : vector<32x290xbf16> to vector<32x256xbf16>
    %69 = arith.select %24, %68, %65 : vector<32x256xi1>, vector<32x256xbf16>
    %70 = vector.extract_strided_slice %59 {offsets = [0, 33], sizes = [32, 256], strides = [1, 1]} : vector<32x290xbf16> to vector<32x256xbf16>
    %71 = vector.extract_strided_slice %59 {offsets = [0, 32], sizes = [32, 256], strides = [1, 1]} : vector<32x290xbf16> to vector<32x256xbf16>
    %72 = arith.select %22, %71, %70 : vector<32x256xi1>, vector<32x256xbf16>
    %73 = vector.extract_strided_slice %59 {offsets = [0, 34], sizes = [32, 256], strides = [1, 1]} : vector<32x290xbf16> to vector<32x256xbf16>
    %74 = arith.select %24, %73, %70 : vector<32x256xi1>, vector<32x256xbf16>
    %75 = tpu.concatenate %62, %60, %64, %67, %65, %69, %72, %70, %74 in 0 : vector<32x256xbf16>, vector<32x256xbf16>, vector<32x256xbf16>, vector<32x256xbf16>, vector<32x256xbf16>, vector<32x256xbf16>, vector<32x256xbf16>, vector<32x256xbf16>, vector<32x256xbf16> -> vector<288x256xbf16>
    %cst_15 = arith.constant dense<0.000000e+00> : vector<32x256xf32>
    %76 = tpu.matmul %1, %75, %cst_15 {dimension_numbers = #tpu.dot_dimension_numbers<[1], [0], [0], [1], [0, 0, 1, 1], [], []>} : vector<32x288xbf16>, vector<288x256xbf16>, vector<32x256xf32> -> vector<32x256xf32>
    %77 = vector.broadcast %3 : vector<32x1xf32> to vector<32x256xf32>
    %78 = arith.addf %76, %77 : vector<32x256xf32>
    %79 = arith.addf %78, %26 : vector<32x256xf32>
    %c0_16 = arith.constant 0 : index
    %c0_17 = arith.constant 0 : index
    %c0_18 = arith.constant 0 : index
    %80 = vector.load %arg6[%c0_16, %c0_17, %c0_18] : memref<1x32x256xf32, #tpu.memory_space<vmem>>, vector<1x32x256xf32>
    %81 = vector.shape_cast %80 : vector<1x32x256xf32> to vector<32x256xf32>
    %82 = vector.shape_cast %79 : vector<32x256xf32> to vector<1x32x256xf32>
    tpu.vector_store %arg6[%c0_16, %c0_17, %c0_18], %82 {strides = array<i32>} : memref<1x32x256xf32, #tpu.memory_space<vmem>>, vector<1x32x256xf32>,
    return
  }
  func.func @transform_0(%arg0: i32) -> (i32, i32, i32) {
    %c0_i32 = arith.constant 0 : i32
    %c0_i32_0 = arith.constant 0 : i32
    %c0_i32_1 = arith.constant 0 : i32
    return %arg0, %c0_i32, %c0_i32_0 : i32, i32, i32
  }
  func.func @transform_1(%arg0: i32) -> (i32, i32) {
    %c0_i32 = arith.constant 0 : i32
    %c0_i32_0 = arith.constant 0 : i32
    %c0_i32_1 = arith.constant 0 : i32
    return %c0_i32, %c0_i32_0 : i32, i32
  }
  func.func @transform_2(%arg0: i32) -> (i32, i32) {
    %c0_i32 = arith.constant 0 : i32
    %c0_i32_0 = arith.constant 0 : i32
    %c0_i32_1 = arith.constant 0 : i32
    return %c0_i32, %c0_i32_0 : i32, i32
  }
  func.func @transform_3(%arg0: i32) -> (i32, i32) {
    %c0_i32 = arith.constant 0 : i32
    %c0_i32_0 = arith.constant 0 : i32
    %c0_i32_1 = arith.constant 0 : i32
    return %c0_i32, %c0_i32_0 : i32, i32
  }
  func.func @transform_4(%arg0: i32) -> (i32, i32) {
    %c0_i32 = arith.constant 0 : i32
    %c0_i32_0 = arith.constant 0 : i32
    %c0_i32_1 = arith.constant 0 : i32
    return %c0_i32, %c0_i32_0 : i32, i32
  }
  func.func @transform_5(%arg0: i32) -> (i32, i32, i32) {
    %c0_i32 = arith.constant 0 : i32
    %c0_i32_0 = arith.constant 0 : i32
    %c0_i32_1 = arith.constant 0 : i32
    return %arg0, %c0_i32, %c0_i32_0 : i32, i32, i32
  }
}

</mosaic_0001>

<llo_original>
// kernel: tpu_custom_call.1
$region0: #{tpu_custom_call.1}
  #allocation0 [shape = 'u32[]', space=smem, size = 0x4, offset = 0x4, fixed_abs, tag = 'smem constant byte address 0x4 - core index']
  #allocation1 [shape = 'u32[72,128]{1,0:T(1,128)}', space=vmem, size = 0x9000, scoped, tag = 'internal scratch']
  %s0 = inlined_call_operand.hbm [shape: f32[2,32,256], index: 0, kind: input, shape index: {}]
  %s1 = inlined_call_operand.vmem [shape: bf16[32,288], index: 1, kind: input, shape index: {}]
  %s2 = inlined_call_operand.vmem [shape: f32[32,1], index: 2, kind: input, shape index: {}]
  %s3 = inlined_call_operand.hbm [shape: bf16[32,288], index: 3, kind: input, shape index: {}]
  %s4 = inlined_call_operand.vmem [shape: f32[32,1], index: 4, kind: input, shape index: {}]
  %s5 = inlined_call_operand.hbm [shape: f32[2,32,256], index: 5, kind: output, shape index: {}]
  %s6 = sld [smem:[#allocation0]]
  $region61: #{tpu_custom_call.1} parent=0
    _
  %s8 = ssub.s32 1, %s6
  %s9 = scalar_select 0, %s8, %s6
  $region1: #{tpu_custom_call.1} parent=0
    #allocation2 [shape = 'u8[65536]{0}', space=vmem, size = 0x10000, scoped, tag = 'input window, operand 0']
    #allocation3 [shape = 's32[2]{0}', space=sflag, size = 0x8, scoped, tag = 'scoped memory for tpu_custom_call.1']
    #allocation4 [shape = 's32[2]{0}', space=sflag, size = 0x8, scoped, tag = 'scoped memory for tpu_custom_call.1']
    #allocation5 [shape = 'u8[24576]{0}', space=vmem, size = 0x6000, scoped, tag = 'input window, operand 3, single buffered']
    #allocation6 [shape = 's32[1]{0}', space=sflag, size = 0x4, scoped, tag = 'scoped memory for tpu_custom_call.1']
    #allocation7 [shape = 'u8[65536]{0}', space=vmem, size = 0x10000, scoped, tag = 'output window, operand 0']
    %10 = vsyncpa [#allocation3], 0
    %s11 = scalar_lea.sflag [#allocation3], 1
    %12 = vsyncpa %s11, 0
    %13 = vsyncpa [#allocation6], 0
    %14 = vsyncpa [#allocation4], 0
    %s15 = scalar_lea.sflag [#allocation4], 1
    %16 = vsyncpa %s15, 0
    loop: start=0, step=1, limit=4
    $region2: #{tpu_custom_call.1} parent=1 // loop_pre_header
      _
    $region3: #{tpu_custom_call.1} parent=1 // loop_header
      %s18 = sphi 0, %s22
      %p19 = scmp.ge.s32.totalorder %s18, 4
      %s28 = sphi 0, %s30
      %s31 = sphi 0, %s28
      %s32 = sphi 0, %s31
      %s48 = sphi 0, %s32
      %s52 = sphi 0, %s52
      %s54 = sphi 0, %s52
      %s55 = sphi 0, %s54
      %s69 = sphi 0, %s55
      %s73 = sphi 0, %s73
      %s75 = sphi 0, %s73
      %s76 = sphi 0, %s75
      %s90 = sphi 0, %s76
      %s94 = sphi 0, %s94
      %s96 = sphi 0, %s94
      %s97 = sphi 0, %s96
      %s111 = sphi 0, %s97
      %s115 = sphi 0, %s115
      %s117 = sphi 0, %s115
      %s118 = sphi 0, %s117
      %s132 = sphi 0, %s118
      %s138 = sphi 0, %s140
      %s141 = sphi 0, %s138
      %s142 = sphi 0, %s141
      %s158 = sphi 0, %s142
    $region4: #{tpu_custom_call.1} parent=1 // loop_header_branch
      %21 = sbr.rel (%p19) target = $region8
    $region5: #{tpu_custom_call.1} parent=1 // loop_body
      %s23 = ssub.s32 %s18, 1
      %s24 = ssub.s32 %s18, 2
      %s25 = sadd.s32 %s18, 1
      %s26 = ssub.s32 %s18, %s25
      %p27 = scmp.eq.s32.totalorder %s26, 0
      %s29 = sadd.s32 %s28, 1
      %s30 = scalar_select %p27, %s28, %s29
      %p33 = pneg %p27
      %p34 = scmp.eq.s32.totalorder %s18, 1
      %p35 = por %p33, %p34
      %p36 = scmp.ne.s32.totalorder %s28, %s31
      %p37 = scmp.eq.s32.totalorder %s18, 0
      %p38 = por %p36, %p37
      %p39 = scmp.ne.s32.totalorder %s28, %s31
      %p40 = scmp.eq.s32.totalorder %s23, 1
      %p41 = por %p39, %p40
      %p42 = scmp.ne.s32.totalorder %s31, %s32
      %p43 = scmp.eq.s32.totalorder %s23, 0
      %p44 = por %p42, %p43
      %p45 = scmp.ne.s32.totalorder %s31, %s32
      %p46 = scmp.eq.s32.totalorder %s24, 1
      %p47 = por %p45, %p46
      %p49 = scmp.ne.s32.totalorder %s32, %s48
      %p50 = scmp.eq.s32.totalorder %s24, 0
      %p51 = por %p49, %p50
      %s53 = sadd.s32 %s52, 1
      %p56 = scmp.eq.s32.totalorder %s18, 1
      %p57 = scmp.ne.s32.totalorder %s52, %s54
      %p58 = scmp.eq.s32.totalorder %s18, 0
      %p59 = por %p57, %p58
      %p60 = scmp.ne.s32.totalorder %s52, %s54
      %p61 = scmp.eq.s32.totalorder %s23, 1
      %p62 = por %p60, %p61
      %p63 = scmp.ne.s32.totalorder %s54, %s55
      %p64 = scmp.eq.s32.totalorder %s23, 0
      %p65 = por %p63, %p64
      %p66 = scmp.ne.s32.totalorder %s54, %s55
      %p67 = scmp.eq.s32.totalorder %s24, 1
      %p68 = por %p66, %p67
      %p70 = scmp.ne.s32.totalorder %s55, %s69
      %p71 = scmp.eq.s32.totalorder %s24, 0
      %p72 = por %p70, %p71
      %s74 = sadd.s32 %s73, 1
      %p77 = scmp.eq.s32.totalorder %s18, 1
      %p78 = scmp.ne.s32.totalorder %s73, %s75
      %p79 = scmp.eq.s32.totalorder %s18, 0
      %p80 = por %p78, %p79
      %p81 = scmp.ne.s32.totalorder %s73, %s75
      %p82 = scmp.eq.s32.totalorder %s23, 1
      %p83 = por %p81, %p82
      %p84 = scmp.ne.s32.totalorder %s75, %s76
      %p85 = scmp.eq.s32.totalorder %s23, 0
      %p86 = por %p84, %p85
      %p87 = scmp.ne.s32.totalorder %s75, %s76
      %p88 = scmp.eq.s32.totalorder %s24, 1
      %p89 = por %p87, %p88
      %p91 = scmp.ne.s32.totalorder %s76, %s90
      %p92 = scmp.eq.s32.totalorder %s24, 0
      %p93 = por %p91, %p92
      %s95 = sadd.s32 %s94, 1
      %p98 = scmp.eq.s32.totalorder %s18, 1
      %p99 = scmp.ne.s32.totalorder %s94, %s96
      %p100 = scmp.eq.s32.totalorder %s18, 0
      %p101 = por %p99, %p100
      %p102 = scmp.ne.s32.totalorder %s94, %s96
      %p103 = scmp.eq.s32.totalorder %s23, 1
      %p104 = por %p102, %p103
      %p105 = scmp.ne.s32.totalorder %s96, %s97
      %p106 = scmp.eq.s32.totalorder %s23, 0
      %p107 = por %p105, %p106
      %p108 = scmp.ne.s32.totalorder %s96, %s97
      %p109 = scmp.eq.s32.totalorder %s24, 1
      %p110 = por %p108, %p109
      %p112 = scmp.ne.s32.totalorder %s97, %s111
      %p113 = scmp.eq.s32.totalorder %s24, 0
      %p114 = por %p112, %p113
      %s116 = sadd.s32 %s115, 1
      %p119 = scmp.eq.s32.totalorder %s18, 1
      %p120 = scmp.ne.s32.totalorder %s115, %s117
      %p121 = scmp.eq.s32.totalorder %s18, 0
      %p122 = por %p120, %p121
      %p123 = scmp.ne.s32.totalorder %s115, %s117
      %p124 = scmp.eq.s32.totalorder %s23, 1
      %p125 = por %p123, %p124
      %p126 = scmp.ne.s32.totalorder %s117, %s118
      %p127 = scmp.eq.s32.totalorder %s23, 0
      %p128 = por %p126, %p127
      %p129 = scmp.ne.s32.totalorder %s117, %s118
      %p130 = scmp.eq.s32.totalorder %s24, 1
      %p131 = por %p129, %p130
      %p133 = scmp.ne.s32.totalorder %s118, %s132
      %p134 = scmp.eq.s32.totalorder %s24, 0
      %p135 = por %p133, %p134
      %s136 = ssub.s32 %s18, %s25
      %p137 = scmp.eq.s32.totalorder %s136, 0
      %s139 = sadd.s32 %s138, 1
      %s140 = scalar_select %p137, %s138, %s139
      %p143 = pneg %p137
      %p144 = scmp.eq.s32.totalorder %s18, 1
      %p145 = por %p143, %p144
      %p146 = scmp.ne.s32.totalorder %s138, %s141
      %p147 = scmp.eq.s32.totalorder %s18, 0
      %p148 = por %p146, %p147
      %p149 = scmp.ne.s32.totalorder %s138, %s141
      %p150 = scmp.eq.s32.totalorder %s23, 1
      %p151 = por %p149, %p150
      %p152 = scmp.ne.s32.totalorder %s141, %s142
      %p153 = scmp.eq.s32.totalorder %s23, 0
      %p154 = por %p152, %p153
      %p155 = scmp.ne.s32.totalorder %s141, %s142
      %p156 = scmp.eq.s32.totalorder %s24, 1
      %p157 = por %p155, %p156
      %p159 = scmp.ne.s32.totalorder %s142, %s158
      %p160 = scmp.eq.s32.totalorder %s24, 0
      %p161 = por %p159, %p160
      %p162 = scmp.le.s32.totalorder 1, %s18
      %p163 = scmp.lt.s32.totalorder %s18, 3
      %p164 = pnand %p162, %p163
      %p165 = pneg %p164
      // Predicated region
      $region9: #{tpu_custom_call.1} parent=5 // pred_check
        _
      $region10: #{tpu_custom_call.1} parent=5 // pred_check_branch
        %167 = sbr.rel (%p164) target = $region12
      $region11: #{tpu_custom_call.1} parent=5 // pred_region
        %s168 = ssub.s32 %s18, 1
        // Predicated region
        $region13: #{tpu_custom_call.1} parent=11 // pred_check
          %p169 = pneg %p65
        $region14: #{tpu_custom_call.1} parent=11 // pred_check_branch
          %171 = sbr.rel (%p169) target = $region16
        $region15: #{tpu_custom_call.1} parent=11 // pred_region
          _
        $region16: #{tpu_custom_call.1} parent=11 // pred_fallthru
          _
        // Predicated region
        $region17: #{tpu_custom_call.1} parent=11 // pred_check
          %p172 = pneg %p86
        $region18: #{tpu_custom_call.1} parent=11 // pred_check_branch
          %174 = sbr.rel (%p172) target = $region20
        $region19: #{tpu_custom_call.1} parent=11 // pred_region
          _
        $region20: #{tpu_custom_call.1} parent=11 // pred_fallthru
          _
        // Predicated region
        $region21: #{tpu_custom_call.1} parent=11 // pred_check
          %p175 = pneg %p107
        $region22: #{tpu_custom_call.1} parent=11 // pred_check_branch
          %177 = sbr.rel (%p175) target = $region24
        $region23: #{tpu_custom_call.1} parent=11 // pred_region
          %179 = vsyncadd [#allocation6], 0
          %s180 = sshll.u32 %s3, 4
          %s181 = int_to_ptr.hbm [resolvable:$true] %s180
          %s182 = sshll.u32 [#allocation5], 4
          %s183 = int_to_ptr.vmem [resolvable:$true] %s182
          %188 = dma.hbm_to_vmem [thread:$0]  %s181, 768, %s183, [#allocation6], 192, 192, 12
        $region24: #{tpu_custom_call.1} parent=11 // pred_fallthru
          _
        // Predicated region
        $region25: #{tpu_custom_call.1} parent=11 // pred_check
          %p189 = pneg %p128
        $region26: #{tpu_custom_call.1} parent=11 // pred_check_branch
          %191 = sbr.rel (%p189) target = $region28
        $region27: #{tpu_custom_call.1} parent=11 // pred_region
          _
        $region28: #{tpu_custom_call.1} parent=11 // pred_fallthru
          _
      $region12: #{tpu_custom_call.1} parent=5 // pred_fallthru
        _
      %p192 = scmp.lt.s32.totalorder %s18, 2
      // Predicated region
      $region29: #{tpu_custom_call.1} parent=5 // pred_check
        %p193 = pneg %p192
      $region30: #{tpu_custom_call.1} parent=5 // pred_check_branch
        %195 = sbr.rel (%p193) target = $region32
      $region31: #{tpu_custom_call.1} parent=5 // pred_region
        // Predicated region
        $region33: #{tpu_custom_call.1} parent=31 // pred_check
          %p196 = pneg %p38
        $region34: #{tpu_custom_call.1} parent=31 // pred_check_branch
          %198 = sbr.rel (%p196) target = $region36
        $region35: #{tpu_custom_call.1} parent=31 // pred_region
          %s199 = sand.u32 %s28, 1
          %s200 = scalar_lea.sflag [#allocation3], %s199
          %s201 = sand.u32 %s28, 1
          %s202 = smul.addr %s201, 64
          %s203 = scalar_lea.vmem [#allocation2], %s202
          %205 = vsyncadd %s200, 0
          %s206 = smul.addr %s18, 8
          %s207 = smul.addr %s206, 8
          %s208 = scalar_lea.hbm %s0, %s207
          %s209 = sshll.u32 %s208, 4
          %s210 = int_to_ptr.hbm [resolvable:$true] %s209
          %s211 = sshll.u32 %s203, 4
          %s212 = int_to_ptr.vmem [resolvable:$true] %s211
          %217 = dma.hbm_to_vmem [thread:$0]  %s210, 1024, %s212, %s200, 256, 256, 16
        $region36: #{tpu_custom_call.1} parent=31 // pred_fallthru
          _
      $region32: #{tpu_custom_call.1} parent=5 // pred_fallthru
        _
      %p218 = scmp.le.s32.totalorder 1, %s18
      %p219 = scmp.lt.s32.totalorder %s18, 3
      %p220 = pnand %p218, %p219
      %p221 = pneg %p220
      // Predicated region
      $region37: #{tpu_custom_call.1} parent=5 // pred_check
        _
      $region38: #{tpu_custom_call.1} parent=5 // pred_check_branch
        %223 = sbr.rel (%p220) target = $region40
      $region39: #{tpu_custom_call.1} parent=5 // pred_region
        %s224 = ssub.s32 %s18, 1
        %s225 = sand.u32 %s31, 1
        %s226 = scalar_lea.sflag [#allocation3], %s225
        %s227 = sand.u32 %s31, 1
        %s228 = smul.addr %s227, 64
        %s229 = scalar_lea.vmem [#allocation2], %s228
        // Predicated region
        $region41: #{tpu_custom_call.1} parent=39 // pred_check
          %p230 = pneg %p44
        $region42: #{tpu_custom_call.1} parent=39 // pred_check_branch
          %232 = sbr.rel (%p230) target = $region44
        $region43: #{tpu_custom_call.1} parent=39 // pred_region
          %234 = dma.done %s226, 1024
        $region44: #{tpu_custom_call.1} parent=39 // pred_fallthru
          _
        // Predicated region
        $region45: #{tpu_custom_call.1} parent=39 // pred_check
          %p235 = pneg %p107
        $region46: #{tpu_custom_call.1} parent=39 // pred_check_branch
          %237 = sbr.rel (%p235) target = $region48
        $region47: #{tpu_custom_call.1} parent=39 // pred_region
          %239 = dma.done [#allocation6], 768
        $region48: #{tpu_custom_call.1} parent=39 // pred_fallthru
          _
        %s240 = sand.u32 %s31, 1
        %s241 = scalar_lea.sflag [#allocation3], %s240
        %s242 = sand.u32 %s31, 1
        %s243 = smul.addr %s242, 64
        %s244 = scalar_lea.vmem [#allocation2], %s243
        %p245 = pneg %p44
        %p246 = pneg %p41
        %p247 = pneg %p65
        %p248 = pneg %p62
        %p249 = pneg %p86
        %p250 = pneg %p83
        %p251 = pneg %p107
        %p252 = pneg %p104
        %p253 = pneg %p128
        %p254 = pneg %p125
        %p255 = pneg %p154
        %p256 = pneg %p151
        %s257 = sand.u32 %s141, 1
        %s258 = scalar_lea.sflag [#allocation4], %s257
        %s259 = sand.u32 %s141, 1
        %s260 = smul.addr %s259, 64
        %s261 = scalar_lea.vmem [#allocation7], %s260
        %v265 = vld [vmem:[%s1] sm:$0xff]
        %v266 = vld [vmem:[%s1 + $0x8] sm:$0xf]
        %v267 = vld [vmem:[%s1 + $0xc] sm:$0xff]
        %v268 = vld [vmem:[%s1 + $0x14] sm:$0xf]
        %v269 = vld [vmem:[%s1 + $0x18] sm:$0xff]
        %v270 = vld [vmem:[%s1 + $0x20] sm:$0xf]
        %v271 = vld [vmem:[%s1 + $0x24] sm:$0xff]
        %v272 = vld [vmem:[%s1 + $0x2c] sm:$0xf]
        %v273 = vld [vmem:[#allocation5] sm:$0xff]
        %v274 = vld [vmem:[#allocation5 + $0x8] sm:$0xf]
        %v275 = vld [vmem:[#allocation5 + $0xc] sm:$0xff]
        %v276 = vld [vmem:[#allocation5 + $0x14] sm:$0xf]
        %v277 = vld [vmem:[#allocation5 + $0x18] sm:$0xff]
        %v278 = vld [vmem:[#allocation5 + $0x20] sm:$0xf]
        %v279 = vld [vmem:[#allocation5 + $0x24] sm:$0xff]
        %v280 = vld [vmem:[#allocation5 + $0x2c] sm:$0xf]
        %v281 = vld [vmem:[%s2] sm:$0xff]
        %v282 = vld [vmem:[%s2 + $0x8] sm:$0xff]
        %v283 = vld [vmem:[%s2 + $0x10] sm:$0xff]
        %v284 = vld [vmem:[%s2 + $0x18] sm:$0xff]
        %v285 = vld [vmem:[%s4] sm:$0xff]
        %v286 = vld [vmem:[%s4 + $0x8] sm:$0xff]
        %v287 = vld [vmem:[%s4 + $0x10] sm:$0xff]
        %v288 = vld [vmem:[%s4 + $0x18] sm:$0xff]
        %v289 = vlaneseq
        %v290 = vand.u32 %v289, 127
        %v291 = vadd.s32 %v290, 128
        %vm292 = vcmp.lt.s32.totalorder %v290, 0
        %v293 = vsub.s32 0, %v290
        %v294 = vsel %vm292, %v293, %v290
        %v295 = vshrl.u32 %v294, 4
        %v296 = vand.u32 %v294, 15
        %v297 = vsub.s32 0, %v296
        %v298 = vsel %vm292, %v297, %v296
        %vm299 = vcmp.lt.s32.totalorder %v291, 0
        %v300 = vsub.s32 0, %v291
        %v301 = vsel %vm299, %v300, %v291
        %v302 = vshrl.u32 %v301, 4
        %v303 = vand.u32 %v301, 15
        %v304 = vsub.s32 0, %v303
        %v305 = vsel %vm299, %v304, %v303
        %vm306 = vcmp.ne.s32.totalorder %v298, 0
        %vm307 = vcmp.ne.s32.totalorder %v305, 0
        %vm308 = vcmp.lt.s32.totalorder %v298, 0
        %vm309 = vcmp.lt.s32.totalorder %v305, 0
        %vm310 = vmand %vm308, %vm306
        %vm311 = vmand %vm309, %vm307
        %v312 = vadd.s32 %v298, 16
        %v313 = vadd.s32 %v305, 16
        %v314 = vsel %vm310, %v312, %v298
        %v315 = vsel %vm311, %v313, %v305
        %vm316 = vcmp.ge.s32.totalorder %v314, 1
        %vm317 = vcmp.ge.s32.totalorder %v315, 1
        %vm318 = vcmp.le.s32.totalorder %v314, 14
        %vm319 = vcmp.le.s32.totalorder %v315, 14
        %v320 = vld [vmem:[%s229] sm:$0xff]
        %v321 = vld [vmem:[%s229 + $0x8] sm:$0xff]
        %v322 = vld [vmem:[%s229 + $0x10] sm:$0xff]
        %v323 = vld [vmem:[%s229 + $0x18] sm:$0xff]
        %v324 = vld [vmem:[%s229 + $0x20] sm:$0xff]
        %v325 = vld [vmem:[%s229 + $0x28] sm:$0xff]
        %v326 = vld [vmem:[%s229 + $0x30] sm:$0xff]
        %v327 = vld [vmem:[%s229 + $0x38] sm:$0xff]
        %v328 = vpack.c.bf16 %v321, %v320
        %v329 = vpack.c.bf16 %v323, %v322
        %v330 = vpack.c.bf16 %v325, %v324
        %v331 = vpack.c.bf16 %v327, %v326
        %v336 = vunpack.c.l.b16 %v328
        %v337 = vunpack.c.l.b16 %v329
        %v338 = vunpack.c.l.b16 %v330
        %v339 = vunpack.c.l.b16 %v331
        %v340 = vpack.c.b16 %v337, %v336
        %v341 = vpack.c.b16 %v339, %v338
        %342 = vrot.lane.b32.xlu0 %v340, 1
        %v343 = vpop.permute.xlu0 %342
        %344 = vrot.lane.b32.xlu0 %v341, 1
        %v345 = vpop.permute.xlu0 %344
        %v346 = vunpack.c.h.b16 %v328
        %v347 = vunpack.c.h.b16 %v329
        %v348 = vunpack.c.h.b16 %v330
        %v349 = vunpack.c.h.b16 %v331
        %v350 = vpack.c.b16 %v347, %v346
        %v351 = vpack.c.b16 %v349, %v348
        %352 = vrot.lane.b32.xlu0 %v340, 17
        %v353 = vpop.permute.xlu0 %352
        %354 = vrot.lane.b32.xlu0 %v350, 17
        %v355 = vpop.permute.xlu0 %354
        %356 = vrot.lane.b32.xlu0 %v341, 17
        %v357 = vpop.permute.xlu0 %356
        %358 = vrot.lane.b32.xlu0 %v351, 17
        %v359 = vpop.permute.xlu0 %358
        %vm360 = vcmask 138240
        %v361 = vsel %vm360, %v353, %v355
        %v362 = vsel %vm360, %v357, %v359
        %365 = vrot.lane.b32.xlu0 %v350, 33
        %v366 = vpop.permute.xlu0 %365
        %367 = vrot.lane.b32.xlu0 %v351, 33
        %v368 = vpop.permute.xlu0 %367
        %369 = vrot.lane.b32.xlu0 %v340, 33
        %v370 = vpop.permute.xlu0 %369
        %371 = vrot.lane.b32.xlu0 %v341, 33
        %v372 = vpop.permute.xlu0 %371
        %vm373 = vcmask 7168
        %v376 = vsel %vm373, %v340, %v343
        %v379 = vsel %vm373, %v341, %v345
        %vm380 = vcmask 138240
        %v382 = vsel %vm380, %v376, %v353
        %v385 = vsel %vm380, %v379, %v357
        %v389 = vsel %vm380, %v355, %v366
        %v392 = vsel %vm380, %v359, %v368
        %vm393 = vcmask 269312
        %v395 = vsel %vm393, %v389, %v370
        %v398 = vsel %vm393, %v392, %v372
        %vm400 = vmpackc.low %vm317, %vm316
        %v401 = vsel %vm400, 65537, 0
        %v402 = vperm.slane %v401, 0
        %v403 = vperm.slane %v401, 4
        %v404 = vunpack.c.l.b16 %v402
        %v405 = vunpack.c.h.b16 %v402
        %v406 = vunpack.c.l.b16 0
        %v407 = vunpack.c.h.b16 0
        %vm408 = vcmp.ne.s32.totalorder %v404, %v406
        %vm409 = vcmp.ne.s32.totalorder %v405, %v407
        %vm410 = vmpackc.low %vm409, %vm408
        %v411 = vunpack.c.l.b16 %v403
        %v412 = vunpack.c.h.b16 %v403
        %v413 = vunpack.c.l.b16 0
        %v414 = vunpack.c.h.b16 0
        %vm415 = vcmp.ne.s32.totalorder %v411, %v413
        %vm416 = vcmp.ne.s32.totalorder %v412, %v414
        %vm417 = vmpackc.low %vm416, %vm415
        %422 = vrot.lane.b32.xlu0 %v382, 127
        %v423 = vpop.permute.xlu0 %422
        %424 = vrot.lane.b32.xlu0 %v361, 127
        %v425 = vpop.permute.xlu0 %424
        %426 = vrot.lane.b32.xlu0 %v395, 127
        %v427 = vpop.permute.xlu0 %426
        %428 = vrot.lane.b32.xlu0 %v385, 127
        %v429 = vpop.permute.xlu0 %428
        %430 = vrot.lane.b32.xlu0 %v362, 127
        %v431 = vpop.permute.xlu0 %430
        %432 = vrot.lane.b32.xlu0 %v398, 127
        %v433 = vpop.permute.xlu0 %432
        %vm434 = vcmask 1039360
        %v435 = vsel %vm434, %v423, %v425
        %v436 = vsel %vm434, %v425, %v427
        %v437 = vsel %vm434, %v429, %v431
        %v438 = vsel %vm434, %v431, %v433
        %v443 = vsel %vm410, %v382, %v435
        %v444 = vsel %vm417, %v361, %v436
        %v445 = vsel %vm410, %v385, %v437
        %v446 = vsel %vm417, %v362, %v438
        %vm447 = vmpackc.low %vm319, %vm318
        %v448 = vsel %vm447, 65537, 0
        %v449 = vperm.slane %v448, 0
        %v450 = vperm.slane %v448, 4
        %451 = vrot.lane.b32.xlu0 %v449, 2
        %v452 = vpop.permute.xlu0 %451
        %453 = vrot.lane.b32.xlu0 %v450, 2
        %v454 = vpop.permute.xlu0 %453
        %vm455 = vcmask 15360
        %v456 = vsel %vm455, %v452, %v454
        %v457 = vunpack.c.l.b16 %v452
        %v458 = vunpack.c.h.b16 %v452
        %v459 = vunpack.c.l.b16 0
        %v460 = vunpack.c.h.b16 0
        %vm461 = vcmp.ne.s32.totalorder %v457, %v459
        %vm462 = vcmp.ne.s32.totalorder %v458, %v460
        %vm463 = vmpackc.low %vm462, %vm461
        %v464 = vunpack.c.l.b16 %v456
        %v465 = vunpack.c.h.b16 %v456
        %v466 = vunpack.c.l.b16 0
        %v467 = vunpack.c.h.b16 0
        %vm468 = vcmp.ne.s32.totalorder %v464, %v466
        %vm469 = vcmp.ne.s32.totalorder %v465, %v467
        %vm470 = vmpackc.low %vm469, %vm468
        %v471 = vunpack.c.l.b16 %v454
        %v472 = vunpack.c.h.b16 %v454
        %v473 = vunpack.c.l.b16 0
        %v474 = vunpack.c.h.b16 0
        %vm475 = vcmp.ne.s32.totalorder %v471, %v473
        %vm476 = vcmp.ne.s32.totalorder %v472, %v474
        %vm477 = vmpackc.low %vm476, %vm475
        %478 = vrot.lane.b32.xlu0 %v382, 1
        %v479 = vpop.permute.xlu0 %478
        %480 = vrot.lane.b32.xlu0 %v361, 1
        %v481 = vpop.permute.xlu0 %480
        %482 = vrot.lane.b32.xlu0 %v395, 1
        %v483 = vpop.permute.xlu0 %482
        %484 = vrot.lane.b32.xlu0 %v385, 1
        %v485 = vpop.permute.xlu0 %484
        %486 = vrot.lane.b32.xlu0 %v362, 1
        %v487 = vpop.permute.xlu0 %486
        %488 = vrot.lane.b32.xlu0 %v398, 1
        %v489 = vpop.permute.xlu0 %488
        %vm490 = vcmask 7168
        %v491 = vsel %vm490, %v479, %v481
        %v492 = vsel %vm490, %v481, %v483
        %v493 = vsel %vm490, %v485, %v487
        %v494 = vsel %vm490, %v487, %v489
        %v501 = vsel %vm463, %v382, %v479
        %v502 = vsel %vm470, %v361, %v491
        %v503 = vsel %vm477, %v395, %v492
        %v504 = vsel %vm463, %v385, %v485
        %v505 = vsel %vm470, %v362, %v493
        %v506 = vsel %vm477, %v398, %v494
        %507 = vrot.lane.b32.xlu0 %v402, 16
        %v508 = vpop.permute.xlu0 %507
        %509 = vrot.lane.b32.xlu0 %v403, 16
        %v510 = vpop.permute.xlu0 %509
        %vm511 = vcmask 130048
        %v512 = vsel %vm511, %v508, %v510
        %v513 = vunpack.c.l.b16 %v508
        %v514 = vunpack.c.h.b16 %v508
        %v515 = vunpack.c.l.b16 0
        %v516 = vunpack.c.h.b16 0
        %vm517 = vcmp.ne.s32.totalorder %v513, %v515
        %vm518 = vcmp.ne.s32.totalorder %v514, %v516
        %vm519 = vmpackc.low %vm518, %vm517
        %v520 = vunpack.c.l.b16 %v512
        %v521 = vunpack.c.h.b16 %v512
        %v522 = vunpack.c.l.b16 0
        %v523 = vunpack.c.h.b16 0
        %vm524 = vcmp.ne.s32.totalorder %v520, %v522
        %vm525 = vcmp.ne.s32.totalorder %v521, %v523
        %vm526 = vmpackc.low %vm525, %vm524
        %v527 = vunpack.c.l.b16 %v510
        %v528 = vunpack.c.h.b16 %v510
        %v529 = vunpack.c.l.b16 0
        %v530 = vunpack.c.h.b16 0
        %vm531 = vcmp.ne.s32.totalorder %v527, %v529
        %vm532 = vcmp.ne.s32.totalorder %v528, %v530
        %vm533 = vmpackc.low %vm532, %vm531
        %v536 = vsel %vm519, %v382, %v435
        %v537 = vsel %vm526, %v361, %v436
        %v538 = vsel %vm533, %v395, %v427
        %v539 = vsel %vm519, %v385, %v437
        %v540 = vsel %vm526, %v362, %v438
        %v541 = vsel %vm533, %v398, %v433
        %542 = vrot.lane.b32.xlu0 %v449, 18
        %v543 = vpop.permute.xlu0 %542
        %544 = vrot.lane.b32.xlu0 %v450, 18
        %v545 = vpop.permute.xlu0 %544
        %vm546 = vcmask 146432
        %v547 = vsel %vm546, %v543, %v545
        %v548 = vunpack.c.l.b16 %v543
        %v549 = vunpack.c.h.b16 %v543
        %v550 = vunpack.c.l.b16 0
        %v551 = vunpack.c.h.b16 0
        %vm552 = vcmp.ne.s32.totalorder %v548, %v550
        %vm553 = vcmp.ne.s32.totalorder %v549, %v551
        %vm554 = vmpackc.low %vm553, %vm552
        %v555 = vunpack.c.l.b16 %v547
        %v556 = vunpack.c.h.b16 %v547
        %v557 = vunpack.c.l.b16 0
        %v558 = vunpack.c.h.b16 0
        %vm559 = vcmp.ne.s32.totalorder %v555, %v557
        %vm560 = vcmp.ne.s32.totalorder %v556, %v558
        %vm561 = vmpackc.low %vm560, %vm559
        %v562 = vunpack.c.l.b16 %v545
        %v563 = vunpack.c.h.b16 %v545
        %v564 = vunpack.c.l.b16 0
        %v565 = vunpack.c.h.b16 0
        %vm566 = vcmp.ne.s32.totalorder %v562, %v564
        %vm567 = vcmp.ne.s32.totalorder %v563, %v565
        %vm568 = vmpackc.low %vm567, %vm566
        %v569 = vsel %vm554, %v382, %v479
        %v570 = vsel %vm561, %v361, %v491
        %v571 = vsel %vm568, %v395, %v492
        %v572 = vsel %vm554, %v385, %v485
        %v573 = vsel %vm561, %v362, %v493
        %v574 = vsel %vm568, %v398, %v494
        %575 = vrot.lane.b32.xlu0 %v402, 32
        %v576 = vpop.permute.xlu0 %575
        %577 = vrot.lane.b32.xlu0 %v403, 32
        %v578 = vpop.permute.xlu0 %577
        %vm579 = vcmask 261120
        %v580 = vsel %vm579, %v576, %v578
        %v581 = vunpack.c.l.b16 %v576
        %v582 = vunpack.c.h.b16 %v576
        %v583 = vunpack.c.l.b16 0
        %v584 = vunpack.c.h.b16 0
        %vm585 = vcmp.ne.s32.totalorder %v581, %v583
        %vm586 = vcmp.ne.s32.totalorder %v582, %v584
        %vm587 = vmpackc.low %vm586, %vm585
        %v588 = vunpack.c.l.b16 %v580
        %v589 = vunpack.c.h.b16 %v580
        %v590 = vunpack.c.l.b16 0
        %v591 = vunpack.c.h.b16 0
        %vm592 = vcmp.ne.s32.totalorder %v588, %v590
        %vm593 = vcmp.ne.s32.totalorder %v589, %v591
        %vm594 = vmpackc.low %vm593, %vm592
        %v595 = vunpack.c.l.b16 %v578
        %v596 = vunpack.c.h.b16 %v578
        %v597 = vunpack.c.l.b16 0
        %v598 = vunpack.c.h.b16 0
        %vm599 = vcmp.ne.s32.totalorder %v595, %v597
        %vm600 = vcmp.ne.s32.totalorder %v596, %v598
        %vm601 = vmpackc.low %vm600, %vm599
        %v602 = vsel %vm587, %v382, %v435
        %v603 = vsel %vm594, %v361, %v436
        %v604 = vsel %vm601, %v395, %v427
        %v605 = vsel %vm587, %v385, %v437
        %v606 = vsel %vm594, %v362, %v438
        %v607 = vsel %vm601, %v398, %v433
        %608 = vrot.lane.b32.xlu0 %v449, 34
        %v609 = vpop.permute.xlu0 %608
        %610 = vrot.lane.b32.xlu0 %v450, 34
        %v611 = vpop.permute.xlu0 %610
        %vm612 = vcmask 277504
        %v613 = vsel %vm612, %v609, %v611
        %v614 = vunpack.c.l.b16 %v609
        %v615 = vunpack.c.h.b16 %v609
        %v616 = vunpack.c.l.b16 0
        %v617 = vunpack.c.h.b16 0
        %vm618 = vcmp.ne.s32.totalorder %v614, %v616
        %vm619 = vcmp.ne.s32.totalorder %v615, %v617
        %vm620 = vmpackc.low %vm619, %vm618
        %v621 = vunpack.c.l.b16 %v613
        %v622 = vunpack.c.h.b16 %v613
        %v623 = vunpack.c.l.b16 0
        %v624 = vunpack.c.h.b16 0
        %vm625 = vcmp.ne.s32.totalorder %v621, %v623
        %vm626 = vcmp.ne.s32.totalorder %v622, %v624
        %vm627 = vmpackc.low %vm626, %vm625
        %v628 = vunpack.c.l.b16 %v611
        %v629 = vunpack.c.h.b16 %v611
        %v630 = vunpack.c.l.b16 0
        %v631 = vunpack.c.h.b16 0
        %vm632 = vcmp.ne.s32.totalorder %v628, %v630
        %vm633 = vcmp.ne.s32.totalorder %v629, %v631
        %vm634 = vmpackc.low %vm633, %vm632
        %v635 = vsel %vm620, %v382, %v479
        %v636 = vsel %vm627, %v361, %v491
        %v637 = vsel %vm634, %v395, %v492
        %v638 = vsel %vm620, %v385, %v485
        %v639 = vsel %vm627, %v362, %v493
        %v640 = vsel %vm634, %v398, %v494
        %647 = vrot.lane.b32.xlu0 %v501, 126
        %v648 = vpop.permute.xlu0 %647
        %649 = vrot.lane.b32.xlu0 %v502, 126
        %v650 = vpop.permute.xlu0 %649
        %651 = vrot.lane.b32.xlu0 %v503, 126
        %v652 = vpop.permute.xlu0 %651
        %653 = vrot.lane.b32.xlu0 %v504, 126
        %v654 = vpop.permute.xlu0 %653
        %655 = vrot.lane.b32.xlu0 %v505, 126
        %v656 = vpop.permute.xlu0 %655
        %657 = vrot.lane.b32.xlu0 %v506, 126
        %v658 = vpop.permute.xlu0 %657
        %vm659 = vcmask 1031168
        %v660 = vsel %vm659, %v648, %v650
        %v661 = vsel %vm659, %v650, %v652
        %v662 = vsel %vm659, %v654, %v656
        %v663 = vsel %vm659, %v656, %v658
        %674 = vrot.lane.b32.xlu0 %v536, 112
        %v675 = vpop.permute.xlu0 %674
        %676 = vrot.lane.b32.xlu0 %v537, 112
        %v677 = vpop.permute.xlu0 %676
        %678 = vrot.lane.b32.xlu0 %v538, 112
        %v679 = vpop.permute.xlu0 %678
        %680 = vrot.lane.b32.xlu0 %v539, 112
        %v681 = vpop.permute.xlu0 %680
        %682 = vrot.lane.b32.xlu0 %v540, 112
        %v683 = vpop.permute.xlu0 %682
        %684 = vrot.lane.b32.xlu0 %v541, 112
        %v685 = vpop.permute.xlu0 %684
        %vm686 = vcmask 916480
        %v687 = vsel %vm686, %v675, %v677
        %v688 = vsel %vm686, %v677, %v679
        %v689 = vsel %vm686, %v681, %v683
        %v690 = vsel %vm686, %v683, %v685
        %695 = vrot.lane.b32.xlu0 %v382, 111
        %v696 = vpop.permute.xlu0 %695
        %697 = vrot.lane.b32.xlu0 %v361, 111
        %v698 = vpop.permute.xlu0 %697
        %699 = vrot.lane.b32.xlu0 %v395, 111
        %v700 = vpop.permute.xlu0 %699
        %701 = vrot.lane.b32.xlu0 %v385, 111
        %v702 = vpop.permute.xlu0 %701
        %703 = vrot.lane.b32.xlu0 %v362, 111
        %v704 = vpop.permute.xlu0 %703
        %705 = vrot.lane.b32.xlu0 %v398, 111
        %v706 = vpop.permute.xlu0 %705
        %vm707 = vcmask 908288
        %v708 = vsel %vm707, %v696, %v698
        %v709 = vsel %vm707, %v698, %v700
        %v710 = vsel %vm707, %v702, %v704
        %v711 = vsel %vm707, %v704, %v706
        %722 = vrot.lane.b32.xlu0 %v569, 110
        %v723 = vpop.permute.xlu0 %722
        %724 = vrot.lane.b32.xlu0 %v570, 110
        %v725 = vpop.permute.xlu0 %724
        %726 = vrot.lane.b32.xlu0 %v571, 110
        %v727 = vpop.permute.xlu0 %726
        %728 = vrot.lane.b32.xlu0 %v572, 110
        %v729 = vpop.permute.xlu0 %728
        %730 = vrot.lane.b32.xlu0 %v573, 110
        %v731 = vpop.permute.xlu0 %730
        %732 = vrot.lane.b32.xlu0 %v574, 110
        %v733 = vpop.permute.xlu0 %732
        %vm734 = vcmask 900096
        %v735 = vsel %vm734, %v723, %v725
        %v736 = vsel %vm734, %v725, %v727
        %v737 = vsel %vm734, %v729, %v731
        %v738 = vsel %vm734, %v731, %v733
        %749 = vrot.lane.b32.xlu0 %v602, 96
        %v750 = vpop.permute.xlu0 %749
        %751 = vrot.lane.b32.xlu0 %v603, 96
        %v752 = vpop.permute.xlu0 %751
        %753 = vrot.lane.b32.xlu0 %v604, 96
        %v754 = vpop.permute.xlu0 %753
        %755 = vrot.lane.b32.xlu0 %v605, 96
        %v756 = vpop.permute.xlu0 %755
        %757 = vrot.lane.b32.xlu0 %v606, 96
        %v758 = vpop.permute.xlu0 %757
        %759 = vrot.lane.b32.xlu0 %v607, 96
        %v760 = vpop.permute.xlu0 %759
        %vm761 = vcmask 785408
        %v762 = vsel %vm761, %v750, %v752
        %v763 = vsel %vm761, %v752, %v754
        %v764 = vsel %vm761, %v756, %v758
        %v765 = vsel %vm761, %v758, %v760
        %770 = vrot.lane.b32.xlu0 %v382, 95
        %v771 = vpop.permute.xlu0 %770
        %772 = vrot.lane.b32.xlu0 %v361, 95
        %v773 = vpop.permute.xlu0 %772
        %774 = vrot.lane.b32.xlu0 %v395, 95
        %v775 = vpop.permute.xlu0 %774
        %776 = vrot.lane.b32.xlu0 %v385, 95
        %v777 = vpop.permute.xlu0 %776
        %778 = vrot.lane.b32.xlu0 %v362, 95
        %v779 = vpop.permute.xlu0 %778
        %780 = vrot.lane.b32.xlu0 %v398, 95
        %v781 = vpop.permute.xlu0 %780
        %vm782 = vcmask 777216
        %v783 = vsel %vm782, %v771, %v773
        %v784 = vsel %vm782, %v773, %v775
        %v785 = vsel %vm782, %v777, %v779
        %v786 = vsel %vm782, %v779, %v781
        %797 = vrot.lane.b32.xlu0 %v635, 94
        %v798 = vpop.permute.xlu0 %797
        %799 = vrot.lane.b32.xlu0 %v636, 94
        %v800 = vpop.permute.xlu0 %799
        %801 = vrot.lane.b32.xlu0 %v637, 94
        %v802 = vpop.permute.xlu0 %801
        %803 = vrot.lane.b32.xlu0 %v638, 94
        %v804 = vpop.permute.xlu0 %803
        %805 = vrot.lane.b32.xlu0 %v639, 94
        %v806 = vpop.permute.xlu0 %805
        %807 = vrot.lane.b32.xlu0 %v640, 94
        %v808 = vpop.permute.xlu0 %807
        %vm809 = vcmask 769024
        %v810 = vsel %vm809, %v798, %v800
        %v811 = vsel %vm809, %v800, %v802
        %v812 = vsel %vm809, %v804, %v806
        %v813 = vsel %vm809, %v806, %v808
        %819 = vset.pattern.permute.xlu0 0
        %820 = vperm.xlu0 %819, %v281
        %v821 = vpop.permute.xlu0 %820
        %824 = vset.pattern.permute.xlu0 0
        %825 = vperm.xlu0 %824, %v282
        %v826 = vpop.permute.xlu0 %825
        %829 = vset.pattern.permute.xlu0 0
        %830 = vperm.xlu0 %829, %v283
        %v831 = vpop.permute.xlu0 %830
        %834 = vset.pattern.permute.xlu0 0
        %835 = vperm.xlu0 %834, %v284
        %v836 = vpop.permute.xlu0 %835
        %v846 = vunpack.c.l.b16 %v265
        %v847 = vunpack.c.h.b16 %v265
        %v848 = vunpack.c.l.b16 %v266
        %v849 = vunpack.c.l.b16 %v267
        %v850 = vunpack.c.h.b16 %v267
        %v851 = vunpack.c.l.b16 %v268
        %v852 = vunpack.c.l.b16 %v269
        %v853 = vunpack.c.h.b16 %v269
        %v854 = vunpack.c.l.b16 %v270
        %v855 = vunpack.c.l.b16 %v271
        %v856 = vunpack.c.h.b16 %v271
        %v857 = vunpack.c.l.b16 %v272
        %v858 = vpack.c.b16 %v849, %v846
        %v859 = vpack.c.b16 %v850, %v847
        %v860 = vpack.c.b16 %v851, %v848
        %v861 = vpack.c.b16 %v855, %v852
        %v862 = vpack.c.b16 %v856, %v853
        %v863 = vpack.c.b16 %v857, %v854
        %vm868 = vcmask 261120
        %v870 = vsel %vm868, %v860, 0
        %v873 = vsel %vm868, %v863, 0
        %875 = vmatpush.bf16.msra.mxu0 %v689
        %876 = vmatpush.bf16.msra.mxu0 %v687
        %877 = vmatpush.bf16.msra.mxu0 %v662
        %878 = vmatpush.bf16.msra.mxu0 %v660
        %879 = vmatpush.bf16.msra.mxu0 %v437
        %880 = vmatpush.bf16.msra.mxu0 %v435
        %881 = vmatpush.bf16.msra.mxu0 %v445
        %882 = vmatpush.bf16.msra.mxu0 %v443
        %883 = vmatmul.bf16.gmra.mxu0 %v858
        %v884 = vpop.f32.mrf.mxu0
        %v885 = vadd.f32 %v821, %v884
        %v886 = vpop.f32.mrf.mxu0
        %v887 = vadd.f32 %v826, %v886
        %888 = vmatmul.bf16.gmra.mxu0 %v861
        %v889 = vpop.f32.mrf.mxu0
        %v890 = vadd.f32 %v831, %v889
        %v891 = vpop.f32.mrf.mxu0
        %v892 = vadd.f32 %v836, %v891
        %893 = vdwg.mxu0
        %894 = vmatpush.bf16.msra.mxu0 %v785
        %895 = vmatpush.bf16.msra.mxu0 %v783
        %896 = vmatpush.bf16.msra.mxu0 %v764
        %897 = vmatpush.bf16.msra.mxu0 %v762
        %898 = vmatpush.bf16.msra.mxu0 %v737
        %899 = vmatpush.bf16.msra.mxu0 %v735
        %900 = vmatpush.bf16.msra.mxu0 %v710
        %901 = vmatpush.bf16.msra.mxu0 %v708
        %902 = vmatmul.bf16.gmra.mxu0 %v859
        %v903 = vpop.f32.mrf.mxu0
        %v904 = vadd.f32 %v885, %v903
        %v905 = vpop.f32.mrf.mxu0
        %v906 = vadd.f32 %v887, %v905
        %907 = vmatmul.bf16.gmra.mxu0 %v862
        %v908 = vpop.f32.mrf.mxu0
        %v909 = vadd.f32 %v890, %v908
        %v910 = vpop.f32.mrf.mxu0
        %v911 = vadd.f32 %v892, %v910
        %912 = vdwg.mxu0
        %913 = vmatpush.bf16.msra.mxu0 0
        %914 = vmatpush.bf16.msra.mxu0 0
        %915 = vmatpush.bf16.msra.mxu0 0
        %916 = vmatpush.bf16.msra.mxu0 0
        %917 = vmatpush.bf16.msra.mxu0 0
        %918 = vmatpush.bf16.msra.mxu0 0
        %919 = vmatpush.bf16.msra.mxu0 %v812
        %920 = vmatpush.bf16.msra.mxu0 %v810
        %921 = vmatmul.bf16.gmra.mxu0 %v870
        %v922 = vpop.f32.mrf.mxu0
        %v923 = vadd.f32 %v904, %v922
        %v924 = vpop.f32.mrf.mxu0
        %v925 = vadd.f32 %v906, %v924
        %926 = vmatmul.bf16.gmra.mxu0 %v873
        %v927 = vpop.f32.mrf.mxu0
        %v928 = vadd.f32 %v909, %v927
        %v929 = vpop.f32.mrf.mxu0
        %v930 = vadd.f32 %v911, %v929
        %931 = vdwg.mxu0
        %932 = vmatpush.bf16.msra.mxu0 %v690
        %933 = vmatpush.bf16.msra.mxu0 %v688
        %934 = vmatpush.bf16.msra.mxu0 %v663
        %935 = vmatpush.bf16.msra.mxu0 %v661
        %936 = vmatpush.bf16.msra.mxu0 %v438
        %937 = vmatpush.bf16.msra.mxu0 %v436
        %938 = vmatpush.bf16.msra.mxu0 %v446
        %939 = vmatpush.bf16.msra.mxu0 %v444
        %940 = vmatmul.bf16.gmra.mxu0 %v858
        %v941 = vpop.f32.mrf.mxu0
        %v942 = vadd.f32 %v821, %v941
        %v943 = vpop.f32.mrf.mxu0
        %v944 = vadd.f32 %v826, %v943
        %945 = vmatmul.bf16.gmra.mxu0 %v861
        %v946 = vpop.f32.mrf.mxu0
        %v947 = vadd.f32 %v831, %v946
        %v948 = vpop.f32.mrf.mxu0
        %v949 = vadd.f32 %v836, %v948
        %950 = vdwg.mxu0
        %951 = vmatpush.bf16.msra.mxu0 %v786
        %952 = vmatpush.bf16.msra.mxu0 %v784
        %953 = vmatpush.bf16.msra.mxu0 %v765
        %954 = vmatpush.bf16.msra.mxu0 %v763
        %955 = vmatpush.bf16.msra.mxu0 %v738
        %956 = vmatpush.bf16.msra.mxu0 %v736
        %957 = vmatpush.bf16.msra.mxu0 %v711
        %958 = vmatpush.bf16.msra.mxu0 %v709
        %959 = vmatmul.bf16.gmra.mxu0 %v859
        %v960 = vpop.f32.mrf.mxu0
        %v961 = vadd.f32 %v942, %v960
        %v962 = vpop.f32.mrf.mxu0
        %v963 = vadd.f32 %v944, %v962
        %964 = vmatmul.bf16.gmra.mxu0 %v862
        %v965 = vpop.f32.mrf.mxu0
        %v966 = vadd.f32 %v947, %v965
        %v967 = vpop.f32.mrf.mxu0
        %v968 = vadd.f32 %v949, %v967
        %969 = vdwg.mxu0
        %970 = vmatpush.bf16.msra.mxu0 0
        %971 = vmatpush.bf16.msra.mxu0 0
        %972 = vmatpush.bf16.msra.mxu0 0
        %973 = vmatpush.bf16.msra.mxu0 0
        %974 = vmatpush.bf16.msra.mxu0 0
        %975 = vmatpush.bf16.msra.mxu0 0
        %976 = vmatpush.bf16.msra.mxu0 %v813
        %977 = vmatpush.bf16.msra.mxu0 %v811
        %978 = vmatmul.bf16.gmra.mxu0 %v870
        %v979 = vpop.f32.mrf.mxu0
        %v980 = vadd.f32 %v961, %v979
        %v981 = vpop.f32.mrf.mxu0
        %v982 = vadd.f32 %v963, %v981
        %983 = vmatmul.bf16.gmra.mxu0 %v873
        %v984 = vpop.f32.mrf.mxu0
        %v985 = vadd.f32 %v966, %v984
        %v986 = vpop.f32.mrf.mxu0
        %v987 = vadd.f32 %v968, %v986
        %988 = vdwg.mxu0
        %v989 = vmax.f32 %v923, 0.0
        %v990 = vmax.f32 %v980, 0.0
        %v991 = vmax.f32 %v925, 0.0
        %v992 = vmax.f32 %v982, 0.0
        %v993 = vmax.f32 %v928, 0.0
        %v994 = vmax.f32 %v985, 0.0
        %v995 = vmax.f32 %v930, 0.0
        %v996 = vmax.f32 %v987, 0.0
        %v997 = vpack.c.bf16 %v990, %v989
        %v998 = vpack.c.bf16 %v992, %v991
        %v999 = vpack.c.bf16 %v994, %v993
        %v1000 = vpack.c.bf16 %v996, %v995
        %v1005 = vunpack.c.l.b16 %v997
        %v1006 = vunpack.c.l.b16 %v998
        %v1007 = vunpack.c.l.b16 %v999
        %v1008 = vunpack.c.l.b16 %v1000
        %v1009 = vpack.c.b16 %v1006, %v1005
        %v1010 = vpack.c.b16 %v1008, %v1007
        %1011 = vrot.lane.b32.xlu0 %v1009, 1
        %v1012 = vpop.permute.xlu0 %1011
        %1013 = vrot.lane.b32.xlu0 %v1010, 1
        %v1014 = vpop.permute.xlu0 %1013
        %v1015 = vunpack.c.h.b16 %v997
        %v1016 = vunpack.c.h.b16 %v998
        %v1017 = vunpack.c.h.b16 %v999
        %v1018 = vunpack.c.h.b16 %v1000
        %v1019 = vpack.c.b16 %v1016, %v1015
        %v1020 = vpack.c.b16 %v1018, %v1017
        %1021 = vrot.lane.b32.xlu0 %v1009, 17
        %v1022 = vpop.permute.xlu0 %1021
        %1023 = vrot.lane.b32.xlu0 %v1019, 17
        %v1024 = vpop.permute.xlu0 %1023
        %1025 = vrot.lane.b32.xlu0 %v1010, 17
        %v1026 = vpop.permute.xlu0 %1025
        %1027 = vrot.lane.b32.xlu0 %v1020, 17
        %v1028 = vpop.permute.xlu0 %1027
        %v1029 = vsel %vm360, %v1022, %v1024
        %v1030 = vsel %vm360, %v1026, %v1028
        %1033 = vrot.lane.b32.xlu0 %v1019, 33
        %v1034 = vpop.permute.xlu0 %1033
        %1035 = vrot.lane.b32.xlu0 %v1020, 33
        %v1036 = vpop.permute.xlu0 %1035
        %1037 = vrot.lane.b32.xlu0 %v1009, 33
        %v1038 = vpop.permute.xlu0 %1037
        %1039 = vrot.lane.b32.xlu0 %v1010, 33
        %v1040 = vpop.permute.xlu0 %1039
        %v1043 = vsel %vm373, %v1009, %v1012
        %v1046 = vsel %vm373, %v1010, %v1014
        %v1048 = vsel %vm380, %v1043, %v1022
        %v1051 = vsel %vm380, %v1046, %v1026
        %v1055 = vsel %vm380, %v1024, %v1034
        %v1058 = vsel %vm380, %v1028, %v1036
        %v1060 = vsel %vm393, %v1055, %v1038
        %v1063 = vsel %vm393, %v1058, %v1040
        %1069 = vrot.lane.b32.xlu0 %v1048, 127
        %v1070 = vpop.permute.xlu0 %1069
        %1071 = vrot.lane.b32.xlu0 %v1029, 127
        %v1072 = vpop.permute.xlu0 %1071
        %1073 = vrot.lane.b32.xlu0 %v1060, 127
        %v1074 = vpop.permute.xlu0 %1073
        %1075 = vrot.lane.b32.xlu0 %v1051, 127
        %v1076 = vpop.permute.xlu0 %1075
        %1077 = vrot.lane.b32.xlu0 %v1030, 127
        %v1078 = vpop.permute.xlu0 %1077
        %1079 = vrot.lane.b32.xlu0 %v1063, 127
        %v1080 = vpop.permute.xlu0 %1079
        %v1081 = vsel %vm434, %v1070, %v1072
        %v1082 = vsel %vm434, %v1072, %v1074
        %v1083 = vsel %vm434, %v1076, %v1078
        %v1084 = vsel %vm434, %v1078, %v1080
        %v1089 = vsel %vm410, %v1048, %v1081
        %v1090 = vsel %vm417, %v1029, %v1082
        %v1091 = vsel %vm410, %v1051, %v1083
        %v1092 = vsel %vm417, %v1030, %v1084
        %1093 = vrot.lane.b32.xlu0 %v1048, 1
        %v1094 = vpop.permute.xlu0 %1093
        %1095 = vrot.lane.b32.xlu0 %v1029, 1
        %v1096 = vpop.permute.xlu0 %1095
        %1097 = vrot.lane.b32.xlu0 %v1060, 1
        %v1098 = vpop.permute.xlu0 %1097
        %1099 = vrot.lane.b32.xlu0 %v1051, 1
        %v1100 = vpop.permute.xlu0 %1099
        %1101 = vrot.lane.b32.xlu0 %v1030, 1
        %v1102 = vpop.permute.xlu0 %1101
        %1103 = vrot.lane.b32.xlu0 %v1063, 1
        %v1104 = vpop.permute.xlu0 %1103
        %v1105 = vsel %vm490, %v1094, %v1096
        %v1106 = vsel %vm490, %v1096, %v1098
        %v1107 = vsel %vm490, %v1100, %v1102
        %v1108 = vsel %vm490, %v1102, %v1104
        %v1115 = vsel %vm463, %v1048, %v1094
        %v1116 = vsel %vm470, %v1029, %v1105
        %v1117 = vsel %vm477, %v1060, %v1106
        %v1118 = vsel %vm463, %v1051, %v1100
        %v1119 = vsel %vm470, %v1030, %v1107
        %v1120 = vsel %vm477, %v1063, %v1108
        %v1123 = vsel %vm519, %v1048, %v1081
        %v1124 = vsel %vm526, %v1029, %v1082
        %v1125 = vsel %vm533, %v1060, %v1074
        %v1126 = vsel %vm519, %v1051, %v1083
        %v1127 = vsel %vm526, %v1030, %v1084
        %v1128 = vsel %vm533, %v1063, %v1080
        %v1129 = vsel %vm554, %v1048, %v1094
        %v1130 = vsel %vm561, %v1029, %v1105
        %v1131 = vsel %vm568, %v1060, %v1106
        %v1132 = vsel %vm554, %v1051, %v1100
        %v1133 = vsel %vm561, %v1030, %v1107
        %v1134 = vsel %vm568, %v1063, %v1108
        %v1135 = vsel %vm587, %v1048, %v1081
        %v1136 = vsel %vm594, %v1029, %v1082
        %v1137 = vsel %vm601, %v1060, %v1074
        %v1138 = vsel %vm587, %v1051, %v1083
        %v1139 = vsel %vm594, %v1030, %v1084
        %v1140 = vsel %vm601, %v1063, %v1080
        %v1141 = vsel %vm620, %v1048, %v1094
        %v1142 = vsel %vm627, %v1029, %v1105
        %v1143 = vsel %vm634, %v1060, %v1106
        %v1144 = vsel %vm620, %v1051, %v1100
        %v1145 = vsel %vm627, %v1030, %v1107
        %v1146 = vsel %vm634, %v1063, %v1108
        %1153 = vrot.lane.b32.xlu0 %v1115, 126
        %v1154 = vpop.permute.xlu0 %1153
        %1155 = vrot.lane.b32.xlu0 %v1116, 126
        %v1156 = vpop.permute.xlu0 %1155
        %1157 = vrot.lane.b32.xlu0 %v1117, 126
        %v1158 = vpop.permute.xlu0 %1157
        %1159 = vrot.lane.b32.xlu0 %v1118, 126
        %v1160 = vpop.permute.xlu0 %1159
        %1161 = vrot.lane.b32.xlu0 %v1119, 126
        %v1162 = vpop.permute.xlu0 %1161
        %1163 = vrot.lane.b32.xlu0 %v1120, 126
        %v1164 = vpop.permute.xlu0 %1163
        %v1165 = vsel %vm659, %v1154, %v1156
        %v1166 = vsel %vm659, %v1156, %v1158
        %v1167 = vsel %vm659, %v1160, %v1162
        %v1168 = vsel %vm659, %v1162, %v1164
        %1179 = vrot.lane.b32.xlu0 %v1123, 112
        %v1180 = vpop.permute.xlu0 %1179
        %1181 = vrot.lane.b32.xlu0 %v1124, 112
        %v1182 = vpop.permute.xlu0 %1181
        %1183 = vrot.lane.b32.xlu0 %v1125, 112
        %v1184 = vpop.permute.xlu0 %1183
        %1185 = vrot.lane.b32.xlu0 %v1126, 112
        %v1186 = vpop.permute.xlu0 %1185
        %1187 = vrot.lane.b32.xlu0 %v1127, 112
        %v1188 = vpop.permute.xlu0 %1187
        %1189 = vrot.lane.b32.xlu0 %v1128, 112
        %v1190 = vpop.permute.xlu0 %1189
        %v1191 = vsel %vm686, %v1180, %v1182
        %v1192 = vsel %vm686, %v1182, %v1184
        %v1193 = vsel %vm686, %v1186, %v1188
        %v1194 = vsel %vm686, %v1188, %v1190
        %1199 = vrot.lane.b32.xlu0 %v1048, 111
        %v1200 = vpop.permute.xlu0 %1199
        %1201 = vrot.lane.b32.xlu0 %v1029, 111
        %v1202 = vpop.permute.xlu0 %1201
        %1203 = vrot.lane.b32.xlu0 %v1060, 111
        %v1204 = vpop.permute.xlu0 %1203
        %1205 = vrot.lane.b32.xlu0 %v1051, 111
        %v1206 = vpop.permute.xlu0 %1205
        %1207 = vrot.lane.b32.xlu0 %v1030, 111
        %v1208 = vpop.permute.xlu0 %1207
        %1209 = vrot.lane.b32.xlu0 %v1063, 111
        %v1210 = vpop.permute.xlu0 %1209
        %v1211 = vsel %vm707, %v1200, %v1202
        %v1212 = vsel %vm707, %v1202, %v1204
        %v1213 = vsel %vm707, %v1206, %v1208
        %v1214 = vsel %vm707, %v1208, %v1210
        %1225 = vrot.lane.b32.xlu0 %v1129, 110
        %v1226 = vpop.permute.xlu0 %1225
        %1227 = vrot.lane.b32.xlu0 %v1130, 110
        %v1228 = vpop.permute.xlu0 %1227
        %1229 = vrot.lane.b32.xlu0 %v1131, 110
        %v1230 = vpop.permute.xlu0 %1229
        %1231 = vrot.lane.b32.xlu0 %v1132, 110
        %v1232 = vpop.permute.xlu0 %1231
        %1233 = vrot.lane.b32.xlu0 %v1133, 110
        %v1234 = vpop.permute.xlu0 %1233
        %1235 = vrot.lane.b32.xlu0 %v1134, 110
        %v1236 = vpop.permute.xlu0 %1235
        %v1237 = vsel %vm734, %v1226, %v1228
        %v1238 = vsel %vm734, %v1228, %v1230
        %v1239 = vsel %vm734, %v1232, %v1234
        %v1240 = vsel %vm734, %v1234, %v1236
        %1251 = vrot.lane.b32.xlu0 %v1135, 96
        %v1252 = vpop.permute.xlu0 %1251
        %1253 = vrot.lane.b32.xlu0 %v1136, 96
        %v1254 = vpop.permute.xlu0 %1253
        %1255 = vrot.lane.b32.xlu0 %v1137, 96
        %v1256 = vpop.permute.xlu0 %1255
        %1257 = vrot.lane.b32.xlu0 %v1138, 96
        %v1258 = vpop.permute.xlu0 %1257
        %1259 = vrot.lane.b32.xlu0 %v1139, 96
        %v1260 = vpop.permute.xlu0 %1259
        %1261 = vrot.lane.b32.xlu0 %v1140, 96
        %v1262 = vpop.permute.xlu0 %1261
        %v1263 = vsel %vm761, %v1252, %v1254
        %v1264 = vsel %vm761, %v1254, %v1256
        %v1265 = vsel %vm761, %v1258, %v1260
        %v1266 = vsel %vm761, %v1260, %v1262
        %1271 = vrot.lane.b32.xlu0 %v1048, 95
        %v1272 = vpop.permute.xlu0 %1271
        %1273 = vrot.lane.b32.xlu0 %v1029, 95
        %v1274 = vpop.permute.xlu0 %1273
        %1275 = vrot.lane.b32.xlu0 %v1060, 95
        %v1276 = vpop.permute.xlu0 %1275
        %1277 = vrot.lane.b32.xlu0 %v1051, 95
        %v1278 = vpop.permute.xlu0 %1277
        %1279 = vrot.lane.b32.xlu0 %v1030, 95
        %v1280 = vpop.permute.xlu0 %1279
        %1281 = vrot.lane.b32.xlu0 %v1063, 95
        %v1282 = vpop.permute.xlu0 %1281
        %v1283 = vsel %vm782, %v1272, %v1274
        %v1284 = vsel %vm782, %v1274, %v1276
        %v1285 = vsel %vm782, %v1278, %v1280
        %v1286 = vsel %vm782, %v1280, %v1282
        %1297 = vrot.lane.b32.xlu0 %v1141, 94
        %v1298 = vpop.permute.xlu0 %1297
        %1299 = vrot.lane.b32.xlu0 %v1142, 94
        %v1300 = vpop.permute.xlu0 %1299
        %1301 = vrot.lane.b32.xlu0 %v1143, 94
        %v1302 = vpop.permute.xlu0 %1301
        %1303 = vrot.lane.b32.xlu0 %v1144, 94
        %v1304 = vpop.permute.xlu0 %1303
        %1305 = vrot.lane.b32.xlu0 %v1145, 94
        %v1306 = vpop.permute.xlu0 %1305
        %1307 = vrot.lane.b32.xlu0 %v1146, 94
        %v1308 = vpop.permute.xlu0 %1307
        %v1309 = vsel %vm809, %v1298, %v1300
        %v1310 = vsel %vm809, %v1300, %v1302
        %v1311 = vsel %vm809, %v1304, %v1306
        %v1312 = vsel %vm809, %v1306, %v1308
        %1318 = vset.pattern.permute.xlu0 0
        %1319 = vperm.xlu0 %1318, %v285
        %v1320 = vpop.permute.xlu0 %1319
        %1323 = vset.pattern.permute.xlu0 0
        %1324 = vperm.xlu0 %1323, %v286
        %v1325 = vpop.permute.xlu0 %1324
        %1328 = vset.pattern.permute.xlu0 0
        %1329 = vperm.xlu0 %1328, %v287
        %v1330 = vpop.permute.xlu0 %1329
        %1333 = vset.pattern.permute.xlu0 0
        %1334 = vperm.xlu0 %1333, %v288
        %v1335 = vpop.permute.xlu0 %1334
        %v1345 = vunpack.c.l.b16 %v273
        %v1346 = vunpack.c.h.b16 %v273
        %v1347 = vunpack.c.l.b16 %v274
        %v1348 = vunpack.c.l.b16 %v275
        %v1349 = vunpack.c.h.b16 %v275
        %v1350 = vunpack.c.l.b16 %v276
        %v1351 = vunpack.c.l.b16 %v277
        %v1352 = vunpack.c.h.b16 %v277
        %v1353 = vunpack.c.l.b16 %v278
        %v1354 = vunpack.c.l.b16 %v279
        %v1355 = vunpack.c.h.b16 %v279
        %v1356 = vunpack.c.l.b16 %v280
        %v1357 = vpack.c.b16 %v1348, %v1345
        %v1358 = vpack.c.b16 %v1349, %v1346
        %v1359 = vpack.c.b16 %v1350, %v1347
        %v1360 = vpack.c.b16 %v1354, %v1351
        %v1361 = vpack.c.b16 %v1355, %v1352
        %v1362 = vpack.c.b16 %v1356, %v1353
        %v1368 = vsel %vm868, %v1359, 0
        %v1371 = vsel %vm868, %v1362, 0
        %1373 = vmatpush.bf16.msra.mxu0 %v1193
        %1374 = vmatpush.bf16.msra.mxu0 %v1191
        %1375 = vmatpush.bf16.msra.mxu0 %v1167
        %1376 = vmatpush.bf16.msra.mxu0 %v1165
        %1377 = vmatpush.bf16.msra.mxu0 %v1083
        %1378 = vmatpush.bf16.msra.mxu0 %v1081
        %1379 = vmatpush.bf16.msra.mxu0 %v1091
        %1380 = vmatpush.bf16.msra.mxu0 %v1089
        %1381 = vmatmul.bf16.gmra.mxu0 %v1357
        %v1382 = vpop.f32.mrf.mxu0
        %v1383 = vadd.f32 %v1320, %v1382
        %v1384 = vpop.f32.mrf.mxu0
        %v1385 = vadd.f32 %v1325, %v1384
        %1386 = vmatmul.bf16.gmra.mxu0 %v1360
        %v1387 = vpop.f32.mrf.mxu0
        %v1388 = vadd.f32 %v1330, %v1387
        %v1389 = vpop.f32.mrf.mxu0
        %v1390 = vadd.f32 %v1335, %v1389
        %1391 = vdwg.mxu0
        %1392 = vmatpush.bf16.msra.mxu0 %v1285
        %1393 = vmatpush.bf16.msra.mxu0 %v1283
        %1394 = vmatpush.bf16.msra.mxu0 %v1265
        %1395 = vmatpush.bf16.msra.mxu0 %v1263
        %1396 = vmatpush.bf16.msra.mxu0 %v1239
        %1397 = vmatpush.bf16.msra.mxu0 %v1237
        %1398 = vmatpush.bf16.msra.mxu0 %v1213
        %1399 = vmatpush.bf16.msra.mxu0 %v1211
        %1400 = vmatmul.bf16.gmra.mxu0 %v1358
        %v1401 = vpop.f32.mrf.mxu0
        %v1402 = vadd.f32 %v1383, %v1401
        %v1403 = vpop.f32.mrf.mxu0
        %v1404 = vadd.f32 %v1385, %v1403
        %1405 = vmatmul.bf16.gmra.mxu0 %v1361
        %v1406 = vpop.f32.mrf.mxu0
        %v1407 = vadd.f32 %v1388, %v1406
        %v1408 = vpop.f32.mrf.mxu0
        %v1409 = vadd.f32 %v1390, %v1408
        %1410 = vdwg.mxu0
        %1411 = vmatpush.bf16.msra.mxu0 0
        %1412 = vmatpush.bf16.msra.mxu0 0
        %1413 = vmatpush.bf16.msra.mxu0 0
        %1414 = vmatpush.bf16.msra.mxu0 0
        %1415 = vmatpush.bf16.msra.mxu0 0
        %1416 = vmatpush.bf16.msra.mxu0 0
        %1417 = vmatpush.bf16.msra.mxu0 %v1311
        %1418 = vmatpush.bf16.msra.mxu0 %v1309
        %1419 = vmatmul.bf16.gmra.mxu0 %v1368
        %v1420 = vpop.f32.mrf.mxu0
        %v1421 = vadd.f32 %v1402, %v1420
        %v1422 = vpop.f32.mrf.mxu0
        %v1423 = vadd.f32 %v1404, %v1422
        %1424 = vmatmul.bf16.gmra.mxu0 %v1371
        %v1425 = vpop.f32.mrf.mxu0
        %v1426 = vadd.f32 %v1407, %v1425
        %v1427 = vpop.f32.mrf.mxu0
        %v1428 = vadd.f32 %v1409, %v1427
        %1429 = vdwg.mxu0
        %1430 = vmatpush.bf16.msra.mxu0 %v1194
        %1431 = vmatpush.bf16.msra.mxu0 %v1192
        %1432 = vmatpush.bf16.msra.mxu0 %v1168
        %1433 = vmatpush.bf16.msra.mxu0 %v1166
        %1434 = vmatpush.bf16.msra.mxu0 %v1084
        %1435 = vmatpush.bf16.msra.mxu0 %v1082
        %1436 = vmatpush.bf16.msra.mxu0 %v1092
        %1437 = vmatpush.bf16.msra.mxu0 %v1090
        %1438 = vmatmul.bf16.gmra.mxu0 %v1357
        %v1439 = vpop.f32.mrf.mxu0
        %v1440 = vadd.f32 %v1320, %v1439
        %v1441 = vpop.f32.mrf.mxu0
        %v1442 = vadd.f32 %v1325, %v1441
        %1443 = vmatmul.bf16.gmra.mxu0 %v1360
        %v1444 = vpop.f32.mrf.mxu0
        %v1445 = vadd.f32 %v1330, %v1444
        %v1446 = vpop.f32.mrf.mxu0
        %v1447 = vadd.f32 %v1335, %v1446
        %1448 = vdwg.mxu0
        %1449 = vmatpush.bf16.msra.mxu0 %v1286
        %1450 = vmatpush.bf16.msra.mxu0 %v1284
        %1451 = vmatpush.bf16.msra.mxu0 %v1266
        %1452 = vmatpush.bf16.msra.mxu0 %v1264
        %1453 = vmatpush.bf16.msra.mxu0 %v1240
        %1454 = vmatpush.bf16.msra.mxu0 %v1238
        %1455 = vmatpush.bf16.msra.mxu0 %v1214
        %1456 = vmatpush.bf16.msra.mxu0 %v1212
        %1457 = vmatmul.bf16.gmra.mxu0 %v1358
        %v1458 = vpop.f32.mrf.mxu0
        %v1459 = vadd.f32 %v1440, %v1458
        %v1460 = vpop.f32.mrf.mxu0
        %v1461 = vadd.f32 %v1442, %v1460
        %1462 = vmatmul.bf16.gmra.mxu0 %v1361
        %v1463 = vpop.f32.mrf.mxu0
        %v1464 = vadd.f32 %v1445, %v1463
        %v1465 = vpop.f32.mrf.mxu0
        %v1466 = vadd.f32 %v1447, %v1465
        %1467 = vdwg.mxu0
        %1468 = vmatpush.bf16.msra.mxu0 0
        %1469 = vmatpush.bf16.msra.mxu0 0
        %1470 = vmatpush.bf16.msra.mxu0 0
        %1471 = vmatpush.bf16.msra.mxu0 0
        %1472 = vmatpush.bf16.msra.mxu0 0
        %1473 = vmatpush.bf16.msra.mxu0 0
        %1474 = vmatpush.bf16.msra.mxu0 %v1312
        %1475 = vmatpush.bf16.msra.mxu0 %v1310
        %1476 = vmatmul.bf16.gmra.mxu0 %v1368
        %v1477 = vpop.f32.mrf.mxu0
        %v1478 = vadd.f32 %v1459, %v1477
        %v1479 = vpop.f32.mrf.mxu0
        %v1480 = vadd.f32 %v1461, %v1479
        %1481 = vmatmul.bf16.gmra.mxu0 %v1371
        %v1482 = vpop.f32.mrf.mxu0
        %v1483 = vadd.f32 %v1464, %v1482
        %v1484 = vpop.f32.mrf.mxu0
        %v1485 = vadd.f32 %v1466, %v1484
        %1486 = vdwg.mxu0
        %v1487 = vadd.f32 %v1421, %v320
        %v1488 = vadd.f32 %v1478, %v321
        %v1489 = vadd.f32 %v1423, %v322
        %v1490 = vadd.f32 %v1480, %v323
        %v1491 = vadd.f32 %v1426, %v324
        %v1492 = vadd.f32 %v1483, %v325
        %v1493 = vadd.f32 %v1428, %v326
        %v1494 = vadd.f32 %v1485, %v327
        %1495 = vst [vmem:[%s261] sm:$0xff] %v1487
        %1496 = vst [vmem:[%s261 + $0x8] sm:$0xff] %v1488
        %1497 = vst [vmem:[%s261 + $0x10] sm:$0xff] %v1489
        %1498 = vst [vmem:[%s261 + $0x18] sm:$0xff] %v1490
        %1499 = vst [vmem:[%s261 + $0x20] sm:$0xff] %v1491
        %1500 = vst [vmem:[%s261 + $0x28] sm:$0xff] %v1492
        %1501 = vst [vmem:[%s261 + $0x30] sm:$0xff] %v1493
        %1502 = vst [vmem:[%s261 + $0x38] sm:$0xff] %v1494
        %s1503 = sand.u32 %s141, 1
        %s1504 = scalar_lea.sflag [#allocation4], %s1503
        %s1505 = sand.u32 %s141, 1
        %s1506 = smul.addr %s1505, 64
        %s1507 = scalar_lea.vmem [#allocation7], %s1506
        // Predicated region
        $region49: #{tpu_custom_call.1} parent=39 // pred_check
          %p1508 = pneg %p151
        $region50: #{tpu_custom_call.1} parent=39 // pred_check_branch
          %1510 = sbr.rel (%p1508) target = $region52
        $region51: #{tpu_custom_call.1} parent=39 // pred_region
          %1512 = vsyncadd %s1504, 0
          %s1513 = smul.addr %s23, 8
          %s1514 = smul.addr %s1513, 8
          %s1515 = scalar_lea.hbm %s5, %s1514
          %s1516 = sshll.u32 %s1507, 4
          %s1517 = int_to_ptr.vmem [resolvable:$true] %s1516
          %s1518 = sshll.u32 %s1515, 4
          %s1519 = int_to_ptr.hbm [resolvable:$true] %s1518
          %1524 = dma.vmem_to_hbm [thread:$0]  %s1517, 1024, %s1519, %s1504, 256, 256, 16
        $region52: #{tpu_custom_call.1} parent=39 // pred_fallthru
          _
      $region40: #{tpu_custom_call.1} parent=5 // pred_fallthru
        _
      %p1525 = scmp.le.s32.totalorder 2, %s18
      // Predicated region
      $region53: #{tpu_custom_call.1} parent=5 // pred_check
        %p1526 = pneg %p1525
      $region54: #{tpu_custom_call.1} parent=5 // pred_check_branch
        %1528 = sbr.rel (%p1526) target = $region56
      $region55: #{tpu_custom_call.1} parent=5 // pred_region
        %s1529 = ssub.s32 %s18, 2
        // Predicated region
        $region57: #{tpu_custom_call.1} parent=55 // pred_check
          %p1530 = pneg %p157
        $region58: #{tpu_custom_call.1} parent=55 // pred_check_branch
          %1532 = sbr.rel (%p1530) target = $region60
        $region59: #{tpu_custom_call.1} parent=55 // pred_region
          %s1533 = sand.u32 %s142, 1
          %s1534 = scalar_lea.sflag [#allocation4], %s1533
          %s1535 = sand.u32 %s142, 1
          %s1536 = smul.addr %s1535, 64
          %s1537 = scalar_lea.vmem [#allocation7], %s1536
          %1539 = dma.done %s1534, 1024
        $region60: #{tpu_custom_call.1} parent=55 // pred_fallthru
          _
      $region56: #{tpu_custom_call.1} parent=5 // pred_fallthru
        _
    $region6: #{tpu_custom_call.1} parent=1 // loop_footer
      %s22 = sadd.s32 1, %s18
    $region7: #{tpu_custom_call.1} parent=1 // loop_footer_branch
      %17 = sbr.rel target = $region3
    $region8: #{tpu_custom_call.1} parent=1 // loop_exit
      _
    %1540 = vsyncpa [#allocation3], 1
    %s1541 = scalar_lea.sflag [#allocation3], 1
    %1542 = vsyncpa %s1541, 1
    %1543 = vsyncpa [#allocation6], 1
    %1544 = vsyncpa [#allocation4], 1
    %s1545 = scalar_lea.sflag [#allocation4], 1
    %1546 = vsyncpa %s1545, 1

</llo_original>
